<compile_context>
chip_gen: v7x
topology: tpu7x:2x2x1
jax: 0.10.0
libtpu: 0.0.40
codegen_flags: <defaults>
</compile_context>

<pallas_src>
import functools

import jax
import jax.numpy as jnp
import numpy as np
from jax import lax
from jax.experimental import pallas as pl
from jax.experimental.pallas import tpu as pltpu


def _mha_kernel(q_ref, mem_ref, kt_ref, v_ref,
                wq_ref, wqa_ref, bqc_ref,
                wfc_ref, bfc_ref, lnw_ref, lnb_ref,
                out_ref, attn_ref,
                acc_sc,
                *, n_head, eps):
    f32 = jnp.float32
    bf16 = jnp.bfloat16

    q_res = q_ref[0]                          # (tq, d_model) f32 residual
    q_bf = q_res.astype(bf16)
    mem_bf = mem_ref[0].astype(bf16)          # (tq, 3*d_model) bf16

    acc_sc[...] = jnp.zeros_like(acc_sc)      # running fc-output accumulator

    for h in range(n_head):
        # Combined per-head query (Q + Qrm); 1/sqrt(d_k) pre-folded into the
        # weights/bias on the host.  Contractions are over d_model / 3*d_model.
        qh = (jnp.dot(q_bf, wq_ref[h], preferred_element_type=f32)
              + jnp.dot(mem_bf, wqa_ref[h], preferred_element_type=f32)
              + bqc_ref[h])                   # (tq, d_k) f32

        # Scores: plain (tq,d_k) x (d_k,Lk) — K is stored pre-transposed per
        # head, so no transpose on the per-tile critical path.
        s = jnp.dot(qh.astype(bf16), kt_ref[0, h], preferred_element_type=f32)
        s = s - jnp.max(s, axis=-1, keepdims=True)
        e = jnp.exp(s)
        # Exact reciprocal: the stored attention rows sum to 1.
        p = e * pl.reciprocal(jnp.sum(e, axis=-1, keepdims=True))
        attn_ref[h, 0] = p                    # lane-dense (tq, Lk) slab

        o_h = jnp.dot(p.astype(bf16), v_ref[0, h], preferred_element_type=f32)
        # Summing per-head fc contributions equals concat_h(o_h) @ Wfc; the
        # in-loop `+=` keeps one live tile and maps to MRB accumulation on v7x.
        acc_sc[...] += jnp.dot(o_h.astype(bf16), wfc_ref[h],
                               preferred_element_type=f32)

    # Residual + LayerNorm (two-pass variance, f32).
    x = q_res + acc_sc[...] + bfc_ref[...]
    mean = jnp.mean(x, axis=-1, keepdims=True)
    xc = x - mean
    var = jnp.mean(xc * xc, axis=-1, keepdims=True)
    y = xc * lax.rsqrt(var + eps)
    out_ref[0] = y * lnw_ref[...] + lnb_ref[...]


def _vmem_limit_bytes():
    cap = 64 * 1024 * 1024
    try:
        cap = int(pltpu.get_tpu_info().vmem_capacity_bytes)
    except Exception:
        pass
    # ~3/4 of capacity (48 MiB on v7x, ~96-100 MiB on v5e/v6e), capped.
    return min((cap * 3) // 4, 100 * 1024 * 1024)


def mha_rmatt_forward(q, k, v, memory, params, *, n_head, d_k, d_v,
                      tile_q=None, eps=1e-5):
    B, Lq, d_model = q.shape
    Lk = k.shape[1]
    assert v.shape[1] == Lk

    if tile_q is None:
        if Lq <= 256:
            tile_q = Lq
        elif Lq % 256 == 0:
            tile_q = 256
        elif Lq % 128 == 0:
            tile_q = 128
        else:
            tile_q = Lq
    assert Lq % tile_q == 0, "Lq must be divisible by tile_q"
    n_qt = Lq // tile_q

    temp = float(np.sqrt(d_k))
    bf16 = jnp.bfloat16
    f32 = jnp.float32

    # --- Host-side prep (cheap, once per call) -------------------------------
    # Fold 1/sqrt(d_k) into query weights/bias; reshape everything head-major
    # (leading head axis -> free ref[h] indexing in-kernel, no lane slicing).
    wq3 = jnp.transpose((params["wq"] / temp).reshape(d_model, n_head, d_k),
                        (1, 0, 2)).astype(bf16)                 # (H, D, dk)
    wqa3 = jnp.transpose((params["wqa"] / temp).reshape(3 * d_model, n_head, d_k),
                         (1, 0, 2)).astype(bf16)                # (H, 3D, dk)
    bqc3 = ((params["bq"] + params["bqa"]) / temp).reshape(n_head, 1, d_k).astype(f32)
    wfc3 = params["wfc"].reshape(n_head, d_v, d_model).astype(bf16)  # (H, dv, D)

    # K/V projections hoisted out of the kernel (f32 XLA matmuls), then laid
    # out head-major in bf16; K pre-transposed so scores are plain matmuls.
    Kp = k @ params["wk"] + params["bk"]                        # (B, Lk, H*dk)
    Vp = v @ params["wv"] + params["bv"]                        # (B, Lk, H*dv)
    Kt = jnp.transpose(Kp.reshape(B, Lk, n_head, d_k), (0, 2, 3, 1)).astype(bf16)
    Vh = jnp.transpose(Vp.reshape(B, Lk, n_head, d_v), (0, 2, 1, 3)).astype(bf16)

    kernel = functools.partial(_mha_kernel, n_head=n_head, eps=eps)

    def const_spec(arr):
        zeros = (0,) * arr.ndim
        return pl.BlockSpec(arr.shape, lambda b, t, z=zeros: z)

    in_specs = [
        pl.BlockSpec((1, tile_q, d_model), lambda b, t: (b, t, 0)),        # q
        pl.BlockSpec((1, tile_q, 3 * d_model), lambda b, t: (b, t, 0)),    # memory
        pl.BlockSpec((1, n_head, d_k, Lk), lambda b, t: (b, 0, 0, 0)),     # K^T
        pl.BlockSpec((1, n_head, Lk, d_v), lambda b, t: (b, 0, 0, 0)),     # V
        const_spec(wq3), const_spec(wqa3), const_spec(bqc3),
        const_spec(wfc3), const_spec(params["bfc"]),
        const_spec(params["lnw"]), const_spec(params["lnb"]),
    ]
    out_specs = (
        pl.BlockSpec((1, tile_q, d_model), lambda b, t: (b, t, 0)),
        pl.BlockSpec((n_head, 1, tile_q, Lk), lambda b, t: (0, b, t, 0)),
    )
    out_shape = (
        jax.ShapeDtypeStruct((B, Lq, d_model), f32),
        jax.ShapeDtypeStruct((n_head, B, Lq, Lk), f32),
    )

    out, attn = pl.pallas_call(
        kernel,
        out_shape=out_shape,
        grid=(B, n_qt),
        in_specs=in_specs,
        out_specs=out_specs,
        scratch_shapes=[pltpu.VMEM((tile_q, d_model), f32)],
        compiler_params=pltpu.CompilerParams(
            # No cross-step scratch carry anymore -> both axes parallel.
            dimension_semantics=("parallel", "parallel"),
            vmem_limit_bytes=_vmem_limit_bytes()),
    )(q, memory, Kt, Vh,
      wq3, wqa3, bqc3, wfc3, params["bfc"], params["lnw"], params["lnb"])

    # PyTorch returns attn shaped (n_head * sz_b, len_q, len_k), head-major.
    return out, attn.reshape(n_head * B, Lq, Lk)


def init_params(key, n_head, d_model, d_k, d_v):
    ks = jax.random.split(key, 8)
    std_qk = np.sqrt(2.0 / (d_model + d_k))
    std_v = np.sqrt(2.0 / (d_model + d_v))
    std_fc = np.sqrt(2.0 / (n_head * d_v + d_model))  # xavier_normal_
    # Weights stored pre-transposed as (in_features, out_features): y = x @ W.
    return {
        "wq": jax.random.normal(ks[0], (d_model, n_head * d_k), jnp.float32) * std_qk,
        "bq": jnp.zeros((1, n_head * d_k), jnp.float32),
        "wqa": jax.random.normal(ks[1], (3 * d_model, n_head * d_k), jnp.float32) * std_qk,
        "bqa": jnp.zeros((1, n_head * d_k), jnp.float32),
        "wk": jax.random.normal(ks[2], (d_model, n_head * d_k), jnp.float32) * std_qk,
        "bk": jnp.zeros((1, n_head * d_k), jnp.float32),
        "wv": jax.random.normal(ks[3], (d_model, n_head * d_v), jnp.float32) * std_v,
        "bv": jnp.zeros((1, n_head * d_v), jnp.float32),
        "wfc": jax.random.normal(ks[4], (n_head * d_v, d_model), jnp.float32) * std_fc,
        "bfc": jnp.zeros((1, d_model), jnp.float32),
        "lnw": jnp.ones((1, d_model), jnp.float32),
        "lnb": jnp.zeros((1, d_model), jnp.float32),
    }


def _reference(q, k, v, memory, params, *, n_head, d_k, d_v, eps=1e-5):
    """Pure-JAX f32 reference of the PyTorch forward (eval, mask=None, fg=1)."""
    B, Lq, d_model = q.shape
    Lk = k.shape[1]
    temp = np.sqrt(d_k)
    Q = q @ params["wq"] + params["bq"]
    Qrm = memory @ params["wqa"] + params["bqa"]
    K = k @ params["wk"] + params["bk"]
    V = v @ params["wv"] + params["bv"]

    def split(x, d):  # (B, L, H*d) -> (H, B, L, d)
        return jnp.transpose(x.reshape(B, -1, n_head, d), (2, 0, 1, 3))

    Qh, Qrh = split(Q, d_k), split(Qrm, d_k)
    Kh, Vhh = split(K, d_k), split(V, d_v)
    scores = (jnp.einsum("hbqd,hbkd->hbqk", Qh, Kh)
              + jnp.einsum("hbqd,hbkd->hbqk", Qrh, Kh)) / temp
    attn = jax.nn.softmax(scores, axis=-1)                       # (H,B,Lq,Lk)
    o = jnp.einsum("hbqk,hbkd->hbqd", attn, Vhh)
    o = jnp.transpose(o, (1, 2, 0, 3)).reshape(B, Lq, n_head * d_v)
    fc = o @ params["wfc"] + params["bfc"]
    x = q + fc
    mu = jnp.mean(x, axis=-1, keepdims=True)
    var = jnp.mean((x - mu) ** 2, axis=-1, keepdims=True)
    y = (x - mu) / jnp.sqrt(var + eps)
    out = y * params["lnw"] + params["lnb"]
    return out, attn.reshape(n_head * B, Lq, Lk)


def _check(q, k, v, memory, params, *, n_head, d_k, d_v, tile_q=None):
    out, attn = mha_rmatt_forward(q, k, v, memory, params,
                                  n_head=n_head, d_k=d_k, d_v=d_v,
                                  tile_q=tile_q)
    jax.block_until_ready((out, attn))
    B, L, d_model = q.shape
    assert out.shape == (B, L, d_model)
    assert attn.shape == (n_head * B, L, k.shape[1])
    assert bool(jnp.all(jnp.isfinite(out)))
    assert bool(jnp.all(jnp.isfinite(attn)))

    out_exp, attn_exp = _reference(q, k, v, memory, params,
                                   n_head=n_head, d_k=d_k, d_v=d_v)
    err_out = float(jnp.max(jnp.abs(out - out_exp)))
    err_attn = float(jnp.max(jnp.abs(attn - attn_exp)))
    # Kernel matmuls use bf16 inputs with f32 accumulation -> loose tolerances.
    assert err_out < 0.35 and err_attn < 0.15, (err_out, err_attn)


if __name__ == "__main__":
    n_head, d_model, d_k, d_v = 4, 32, 8, 8

    key = jax.random.PRNGKey(0)
    kq, kk, kv, km, kp = jax.random.split(key, 5)
    params = init_params(kp, n_head, d_model, d_k, d_v)

    # Main config (single q-tile per batch element).
    B, L = 2, 8
    q = jax.random.normal(kq, (B, L, d_model), jnp.float32)
    k = jax.random.normal(kk, (B, L, d_model), jnp.float32)
    v = jax.random.normal(kv, (B, L, d_model), jnp.float32)
    memory = jax.random.normal(km, (B, L, 3 * d_model), jnp.float32)
    _check(q, k, v, memory, params, n_head=n_head, d_k=d_k, d_v=d_v)

    # Exercise the multi-q-tile path (Lq split into two tiles of 8).
    B2, L2 = 1, 16
    q2 = jax.random.normal(kq, (B2, L2, d_model), jnp.float32)
    k2 = jax.random.normal(kk, (B2, L2, d_model), jnp.float32)
    v2 = jax.random.normal(kv, (B2, L2, d_model), jnp.float32)
    memory2 = jax.random.normal(km, (B2, L2, 3 * d_model), jnp.float32)
    _check(q2, k2, v2, memory2, params, n_head=n_head, d_k=d_k, d_v=d_v,
           tile_q=8)

    print("KERNEL_OK")
</pallas_src>

<mosaic_0001>
module attributes {stable_mosaic.version = 11 : i64} {
  func.func @_mha_kernel(%arg0: i32, %arg1: i32, %arg2: memref<1x8x32xf32, #tpu.memory_space<vmem>>, %arg3: memref<1x8x96xf32, #tpu.memory_space<vmem>>, %arg4: memref<1x4x8x8xbf16, #tpu.memory_space<vmem>>, %arg5: memref<1x4x8x8xbf16, #tpu.memory_space<vmem>>, %arg6: memref<4x32x8xbf16, #tpu.memory_space<vmem>>, %arg7: memref<4x96x8xbf16, #tpu.memory_space<vmem>>, %arg8: memref<4x1x8xf32, #tpu.memory_space<vmem>>, %arg9: memref<4x8x32xbf16, #tpu.memory_space<vmem>>, %arg10: memref<1x32xf32, #tpu.memory_space<vmem>>, %arg11: memref<1x32xf32, #tpu.memory_space<vmem>>, %arg12: memref<1x32xf32, #tpu.memory_space<vmem>>, %arg13: memref<1x8x32xf32, #tpu.memory_space<vmem>>, %arg14: memref<4x1x8x8xf32, #tpu.memory_space<vmem>>, %arg15: memref<8x32xf32, #tpu.memory_space<vmem>>) attributes {dimension_semantics = [#tpu.dimension_semantics<parallel>, #tpu.dimension_semantics<parallel>], iteration_bounds = array<i64: 2, 1>, scalar_prefetch = 0 : i64, scratch_operands = 1 : i64, tpu.core_type = #tpu.core_type<tc>, window_params = [{transform_indices = @transform_0, window_bounds = array<i64: 1, 8, 32>}, {transform_indices = @transform_1, window_bounds = array<i64: 1, 8, 96>}, {transform_indices = @transform_2, window_bounds = array<i64: 1, 4, 8, 8>}, {transform_indices = @transform_3, window_bounds = array<i64: 1, 4, 8, 8>}, {pipeline_mode = #tpu.pipeline_mode<synchronous>, transform_indices = @transform_4, window_bounds = array<i64: 4, 32, 8>}, {pipeline_mode = #tpu.pipeline_mode<synchronous>, transform_indices = @transform_5, window_bounds = array<i64: 4, 96, 8>}, {pipeline_mode = #tpu.pipeline_mode<synchronous>, transform_indices = @transform_6, window_bounds = array<i64: 4, 1, 8>}, {pipeline_mode = #tpu.pipeline_mode<synchronous>, transform_indices = @transform_7, window_bounds = array<i64: 4, 8, 32>}, {pipeline_mode = #tpu.pipeline_mode<synchronous>, transform_indices = @transform_8, window_bounds = array<i64: 1, 32>}, {pipeline_mode = #tpu.pipeline_mode<synchronous>, transform_indices = @transform_9, window_bounds = array<i64: 1, 32>}, {pipeline_mode = #tpu.pipeline_mode<synchronous>, transform_indices = @transform_10, window_bounds = array<i64: 1, 32>}, {transform_indices = @transform_11, window_bounds = array<i64: 1, 8, 32>}, {transform_indices = @transform_12, window_bounds = array<i64: 4, 1, 8, 8>}]} {
    %c0 = arith.constant 0 : index
    %c0_0 = arith.constant 0 : index
    %c0_1 = arith.constant 0 : index
    %0 = vector.load %arg2[%c0, %c0_0, %c0_1] : memref<1x8x32xf32, #tpu.memory_space<vmem>>, vector<1x8x32xf32>
    %1 = vector.shape_cast %0 : vector<1x8x32xf32> to vector<8x32xf32>
    %2 = arith.truncf %1 : vector<8x32xf32> to vector<8x32xbf16>
    %c0_2 = arith.constant 0 : index
    %c0_3 = arith.constant 0 : index
    %c0_4 = arith.constant 0 : index
    %3 = vector.load %arg3[%c0_2, %c0_3, %c0_4] : memref<1x8x96xf32, #tpu.memory_space<vmem>>, vector<1x8x96xf32>
    %4 = vector.shape_cast %3 : vector<1x8x96xf32> to vector<8x96xf32>
    %5 = arith.truncf %4 : vector<8x96xf32> to vector<8x96xbf16>
    %cst = arith.constant 0.000000e+00 : f32
    %6 = vector.broadcast %cst : f32 to vector<8x32xf32>
    %c0_5 = arith.constant 0 : index
    %c0_6 = arith.constant 0 : index
    %7 = vector.load %arg15[%c0_5, %c0_6] : memref<8x32xf32, #tpu.memory_space<vmem>>, vector<8x32xf32>
    tpu.vector_store %arg15[%c0_5, %c0_6], %6 {strides = array<i32>} : memref<8x32xf32, #tpu.memory_space<vmem>>, vector<8x32xf32>,
    %c0_7 = arith.constant 0 : index
    %c0_8 = arith.constant 0 : index
    %c0_9 = arith.constant 0 : index
    %8 = vector.load %arg6[%c0_7, %c0_8, %c0_9] : memref<4x32x8xbf16, #tpu.memory_space<vmem>>, vector<1x32x8xbf16>
    %9 = vector.shape_cast %8 : vector<1x32x8xbf16> to vector<32x8xbf16>
    %cst_10 = arith.constant dense<0.000000e+00> : vector<8x8xf32>
    %10 = tpu.matmul %2, %9, %cst_10 {dimension_numbers = #tpu.dot_dimension_numbers<[1], [0], [0], [1], [0, 0, 1, 1], [], []>} : vector<8x32xbf16>, vector<32x8xbf16>, vector<8x8xf32> -> vector<8x8xf32>
    %c0_11 = arith.constant 0 : index
    %c0_12 = arith.constant 0 : index
    %c0_13 = arith.constant 0 : index
    %11 = vector.load %arg7[%c0_11, %c0_12, %c0_13] : memref<4x96x8xbf16, #tpu.memory_space<vmem>>, vector<1x96x8xbf16>
    %12 = vector.shape_cast %11 : vector<1x96x8xbf16> to vector<96x8xbf16>
    %cst_14 = arith.constant dense<0.000000e+00> : vector<8x8xf32>
    %13 = tpu.matmul %5, %12, %cst_14 {dimension_numbers = #tpu.dot_dimension_numbers<[1], [0], [0], [1], [0, 0, 1, 1], [], []>} : vector<8x96xbf16>, vector<96x8xbf16>, vector<8x8xf32> -> vector<8x8xf32>
    %14 = arith.addf %10, %13 : vector<8x8xf32>
    %c0_15 = arith.constant 0 : index
    %c0_16 = arith.constant 0 : index
    %c0_17 = arith.constant 0 : index
    %15 = vector.load %arg8[%c0_15, %c0_16, %c0_17] : memref<4x1x8xf32, #tpu.memory_space<vmem>>, vector<1x1x8xf32>
    %16 = vector.shape_cast %15 : vector<1x1x8xf32> to vector<1x8xf32>
    %17 = vector.broadcast %16 : vector<1x8xf32> to vector<8x8xf32>
    %18 = arith.addf %14, %17 : vector<8x8xf32>
    %19 = arith.truncf %18 : vector<8x8xf32> to vector<8x8xbf16>
    %c0_18 = arith.constant 0 : index
    %c0_19 = arith.constant 0 : index
    %c0_20 = arith.constant 0 : index
    %c0_21 = arith.constant 0 : index
    %20 = vector.load %arg4[%c0_18, %c0_19, %c0_20, %c0_21] : memref<1x4x8x8xbf16, #tpu.memory_space<vmem>>, vector<1x1x8x8xbf16>
    %21 = vector.shape_cast %20 : vector<1x1x8x8xbf16> to vector<8x8xbf16>
    %cst_22 = arith.constant dense<0.000000e+00> : vector<8x8xf32>
    %22 = tpu.matmul %19, %21, %cst_22 {dimension_numbers = #tpu.dot_dimension_numbers<[1], [0], [0], [1], [0, 0, 1, 1], [], []>} : vector<8x8xbf16>, vector<8x8xbf16>, vector<8x8xf32> -> vector<8x8xf32>
    %cst_23 = arith.constant dense<0xFF800000> : vector<8xf32>
    %23 = vector.multi_reduction <maximumf>, %22, %cst_23 [1] : vector<8x8xf32> to vector<8xf32>
    %24 = vector.shape_cast %23 : vector<8xf32> to vector<8x1xf32>
    %25 = vector.broadcast %24 : vector<8x1xf32> to vector<8x8xf32>
    %26 = arith.subf %22, %25 : vector<8x8xf32>
    %27 = math.exp %26 : vector<8x8xf32>
    %cst_24 = arith.constant dense<0.000000e+00> : vector<8xf32>
    %28 = vector.multi_reduction <add>, %27, %cst_24 [1] : vector<8x8xf32> to vector<8xf32>
    %29 = vector.shape_cast %28 : vector<8xf32> to vector<8x1xf32>
    %30 = tpu.reciprocal %29 : vector<8x1xf32> -> vector<8x1xf32>
    %31 = vector.broadcast %30 : vector<8x1xf32> to vector<8x8xf32>
    %32 = arith.mulf %27, %31 : vector<8x8xf32>
    %c0_25 = arith.constant 0 : index
    %c0_26 = arith.constant 0 : index
    %c0_27 = arith.constant 0 : index
    %c0_28 = arith.constant 0 : index
    %33 = vector.load %arg14[%c0_25, %c0_26, %c0_27, %c0_28] : memref<4x1x8x8xf32, #tpu.memory_space<vmem>>, vector<1x1x8x8xf32>
    %34 = vector.shape_cast %33 : vector<1x1x8x8xf32> to vector<8x8xf32>
    %35 = vector.shape_cast %32 : vector<8x8xf32> to vector<1x1x8x8xf32>
    tpu.vector_store %arg14[%c0_25, %c0_26, %c0_27, %c0_28], %35 {strides = array<i32>} : memref<4x1x8x8xf32, #tpu.memory_space<vmem>>, vector<1x1x8x8xf32>,
    %36 = arith.truncf %32 : vector<8x8xf32> to vector<8x8xbf16>
    %c0_29 = arith.constant 0 : index
    %c0_30 = arith.constant 0 : index
    %c0_31 = arith.constant 0 : index
    %c0_32 = arith.constant 0 : index
    %37 = vector.load %arg5[%c0_29, %c0_30, %c0_31, %c0_32] : memref<1x4x8x8xbf16, #tpu.memory_space<vmem>>, vector<1x1x8x8xbf16>
    %38 = vector.shape_cast %37 : vector<1x1x8x8xbf16> to vector<8x8xbf16>
    %cst_33 = arith.constant dense<0.000000e+00> : vector<8x8xf32>
    %39 = tpu.matmul %36, %38, %cst_33 {dimension_numbers = #tpu.dot_dimension_numbers<[1], [0], [0], [1], [0, 0, 1, 1], [], []>} : vector<8x8xbf16>, vector<8x8xbf16>, vector<8x8xf32> -> vector<8x8xf32>
    %c0_34 = arith.constant 0 : index
    %c0_35 = arith.constant 0 : index
    %40 = vector.load %arg15[%c0_34, %c0_35] : memref<8x32xf32, #tpu.memory_space<vmem>>, vector<8x32xf32>
    %41 = arith.truncf %39 : vector<8x8xf32> to vector<8x8xbf16>
    %c0_36 = arith.constant 0 : index
    %c0_37 = arith.constant 0 : index
    %c0_38 = arith.constant 0 : index
    %42 = vector.load %arg9[%c0_36, %c0_37, %c0_38] : memref<4x8x32xbf16, #tpu.memory_space<vmem>>, vector<1x8x32xbf16>
    %43 = vector.shape_cast %42 : vector<1x8x32xbf16> to vector<8x32xbf16>
    %cst_39 = arith.constant dense<0.000000e+00> : vector<8x32xf32>
    %44 = tpu.matmul %41, %43, %cst_39 {dimension_numbers = #tpu.dot_dimension_numbers<[1], [0], [0], [1], [0, 0, 1, 1], [], []>} : vector<8x8xbf16>, vector<8x32xbf16>, vector<8x32xf32> -> vector<8x32xf32>
    %45 = arith.addf %40, %44 : vector<8x32xf32>
    %c0_40 = arith.constant 0 : index
    %c0_41 = arith.constant 0 : index
    %46 = vector.load %arg15[%c0_40, %c0_41] : memref<8x32xf32, #tpu.memory_space<vmem>>, vector<8x32xf32>
    tpu.vector_store %arg15[%c0_40, %c0_41], %45 {strides = array<i32>} : memref<8x32xf32, #tpu.memory_space<vmem>>, vector<8x32xf32>,
    %c1 = arith.constant 1 : index
    %c0_42 = arith.constant 0 : index
    %c0_43 = arith.constant 0 : index
    %47 = vector.load %arg6[%c1, %c0_42, %c0_43] : memref<4x32x8xbf16, #tpu.memory_space<vmem>>, vector<1x32x8xbf16>
    %48 = vector.shape_cast %47 : vector<1x32x8xbf16> to vector<32x8xbf16>
    %cst_44 = arith.constant dense<0.000000e+00> : vector<8x8xf32>
    %49 = tpu.matmul %2, %48, %cst_44 {dimension_numbers = #tpu.dot_dimension_numbers<[1], [0], [0], [1], [0, 0, 1, 1], [], []>} : vector<8x32xbf16>, vector<32x8xbf16>, vector<8x8xf32> -> vector<8x8xf32>
    %c1_45 = arith.constant 1 : index
    %c0_46 = arith.constant 0 : index
    %c0_47 = arith.constant 0 : index
    %50 = vector.load %arg7[%c1_45, %c0_46, %c0_47] : memref<4x96x8xbf16, #tpu.memory_space<vmem>>, vector<1x96x8xbf16>
    %51 = vector.shape_cast %50 : vector<1x96x8xbf16> to vector<96x8xbf16>
    %cst_48 = arith.constant dense<0.000000e+00> : vector<8x8xf32>
    %52 = tpu.matmul %5, %51, %cst_48 {dimension_numbers = #tpu.dot_dimension_numbers<[1], [0], [0], [1], [0, 0, 1, 1], [], []>} : vector<8x96xbf16>, vector<96x8xbf16>, vector<8x8xf32> -> vector<8x8xf32>
    %53 = arith.addf %49, %52 : vector<8x8xf32>
    %c1_49 = arith.constant 1 : index
    %c0_50 = arith.constant 0 : index
    %c0_51 = arith.constant 0 : index
    %54 = vector.load %arg8[%c1_49, %c0_50, %c0_51] : memref<4x1x8xf32, #tpu.memory_space<vmem>>, vector<1x1x8xf32>
    %55 = vector.shape_cast %54 : vector<1x1x8xf32> to vector<1x8xf32>
    %56 = vector.broadcast %55 : vector<1x8xf32> to vector<8x8xf32>
    %57 = arith.addf %53, %56 : vector<8x8xf32>
    %58 = arith.truncf %57 : vector<8x8xf32> to vector<8x8xbf16>
    %c0_52 = arith.constant 0 : index
    %c1_53 = arith.constant 1 : index
    %c0_54 = arith.constant 0 : index
    %c0_55 = arith.constant 0 : index
    %59 = vector.load %arg4[%c0_52, %c1_53, %c0_54, %c0_55] : memref<1x4x8x8xbf16, #tpu.memory_space<vmem>>, vector<1x1x8x8xbf16>
    %60 = vector.shape_cast %59 : vector<1x1x8x8xbf16> to vector<8x8xbf16>
    %cst_56 = arith.constant dense<0.000000e+00> : vector<8x8xf32>
    %61 = tpu.matmul %58, %60, %cst_56 {dimension_numbers = #tpu.dot_dimension_numbers<[1], [0], [0], [1], [0, 0, 1, 1], [], []>} : vector<8x8xbf16>, vector<8x8xbf16>, vector<8x8xf32> -> vector<8x8xf32>
    %cst_57 = arith.constant dense<0xFF800000> : vector<8xf32>
    %62 = vector.multi_reduction <maximumf>, %61, %cst_57 [1] : vector<8x8xf32> to vector<8xf32>
    %63 = vector.shape_cast %62 : vector<8xf32> to vector<8x1xf32>
    %64 = vector.broadcast %63 : vector<8x1xf32> to vector<8x8xf32>
    %65 = arith.subf %61, %64 : vector<8x8xf32>
    %66 = math.exp %65 : vector<8x8xf32>
    %cst_58 = arith.constant dense<0.000000e+00> : vector<8xf32>
    %67 = vector.multi_reduction <add>, %66, %cst_58 [1] : vector<8x8xf32> to vector<8xf32>
    %68 = vector.shape_cast %67 : vector<8xf32> to vector<8x1xf32>
    %69 = tpu.reciprocal %68 : vector<8x1xf32> -> vector<8x1xf32>
    %70 = vector.broadcast %69 : vector<8x1xf32> to vector<8x8xf32>
    %71 = arith.mulf %66, %70 : vector<8x8xf32>
    %c1_59 = arith.constant 1 : index
    %c0_60 = arith.constant 0 : index
    %c0_61 = arith.constant 0 : index
    %c0_62 = arith.constant 0 : index
    %72 = vector.load %arg14[%c1_59, %c0_60, %c0_61, %c0_62] : memref<4x1x8x8xf32, #tpu.memory_space<vmem>>, vector<1x1x8x8xf32>
    %73 = vector.shape_cast %72 : vector<1x1x8x8xf32> to vector<8x8xf32>
    %74 = vector.shape_cast %71 : vector<8x8xf32> to vector<1x1x8x8xf32>
    tpu.vector_store %arg14[%c1_59, %c0_60, %c0_61, %c0_62], %74 {strides = array<i32>} : memref<4x1x8x8xf32, #tpu.memory_space<vmem>>, vector<1x1x8x8xf32>,
    %75 = arith.truncf %71 : vector<8x8xf32> to vector<8x8xbf16>
    %c0_63 = arith.constant 0 : index
    %c1_64 = arith.constant 1 : index
    %c0_65 = arith.constant 0 : index
    %c0_66 = arith.constant 0 : index
    %76 = vector.load %arg5[%c0_63, %c1_64, %c0_65, %c0_66] : memref<1x4x8x8xbf16, #tpu.memory_space<vmem>>, vector<1x1x8x8xbf16>
    %77 = vector.shape_cast %76 : vector<1x1x8x8xbf16> to vector<8x8xbf16>
    %cst_67 = arith.constant dense<0.000000e+00> : vector<8x8xf32>
    %78 = tpu.matmul %75, %77, %cst_67 {dimension_numbers = #tpu.dot_dimension_numbers<[1], [0], [0], [1], [0, 0, 1, 1], [], []>} : vector<8x8xbf16>, vector<8x8xbf16>, vector<8x8xf32> -> vector<8x8xf32>
    %c0_68 = arith.constant 0 : index
    %c0_69 = arith.constant 0 : index
    %79 = vector.load %arg15[%c0_68, %c0_69] : memref<8x32xf32, #tpu.memory_space<vmem>>, vector<8x32xf32>
    %80 = arith.truncf %78 : vector<8x8xf32> to vector<8x8xbf16>
    %c1_70 = arith.constant 1 : index
    %c0_71 = arith.constant 0 : index
    %c0_72 = arith.constant 0 : index
    %81 = vector.load %arg9[%c1_70, %c0_71, %c0_72] : memref<4x8x32xbf16, #tpu.memory_space<vmem>>, vector<1x8x32xbf16>
    %82 = vector.shape_cast %81 : vector<1x8x32xbf16> to vector<8x32xbf16>
    %cst_73 = arith.constant dense<0.000000e+00> : vector<8x32xf32>
    %83 = tpu.matmul %80, %82, %cst_73 {dimension_numbers = #tpu.dot_dimension_numbers<[1], [0], [0], [1], [0, 0, 1, 1], [], []>} : vector<8x8xbf16>, vector<8x32xbf16>, vector<8x32xf32> -> vector<8x32xf32>
    %84 = arith.addf %79, %83 : vector<8x32xf32>
    %c0_74 = arith.constant 0 : index
    %c0_75 = arith.constant 0 : index
    %85 = vector.load %arg15[%c0_74, %c0_75] : memref<8x32xf32, #tpu.memory_space<vmem>>, vector<8x32xf32>
    tpu.vector_store %arg15[%c0_74, %c0_75], %84 {strides = array<i32>} : memref<8x32xf32, #tpu.memory_space<vmem>>, vector<8x32xf32>,
    %c2 = arith.constant 2 : index
    %c0_76 = arith.constant 0 : index
    %c0_77 = arith.constant 0 : index
    %86 = vector.load %arg6[%c2, %c0_76, %c0_77] : memref<4x32x8xbf16, #tpu.memory_space<vmem>>, vector<1x32x8xbf16>
    %87 = vector.shape_cast %86 : vector<1x32x8xbf16> to vector<32x8xbf16>
    %cst_78 = arith.constant dense<0.000000e+00> : vector<8x8xf32>
    %88 = tpu.matmul %2, %87, %cst_78 {dimension_numbers = #tpu.dot_dimension_numbers<[1], [0], [0], [1], [0, 0, 1, 1], [], []>} : vector<8x32xbf16>, vector<32x8xbf16>, vector<8x8xf32> -> vector<8x8xf32>
    %c2_79 = arith.constant 2 : index
    %c0_80 = arith.constant 0 : index
    %c0_81 = arith.constant 0 : index
    %89 = vector.load %arg7[%c2_79, %c0_80, %c0_81] : memref<4x96x8xbf16, #tpu.memory_space<vmem>>, vector<1x96x8xbf16>
    %90 = vector.shape_cast %89 : vector<1x96x8xbf16> to vector<96x8xbf16>
    %cst_82 = arith.constant dense<0.000000e+00> : vector<8x8xf32>
    %91 = tpu.matmul %5, %90, %cst_82 {dimension_numbers = #tpu.dot_dimension_numbers<[1], [0], [0], [1], [0, 0, 1, 1], [], []>} : vector<8x96xbf16>, vector<96x8xbf16>, vector<8x8xf32> -> vector<8x8xf32>
    %92 = arith.addf %88, %91 : vector<8x8xf32>
    %c2_83 = arith.constant 2 : index
    %c0_84 = arith.constant 0 : index
    %c0_85 = arith.constant 0 : index
    %93 = vector.load %arg8[%c2_83, %c0_84, %c0_85] : memref<4x1x8xf32, #tpu.memory_space<vmem>>, vector<1x1x8xf32>
    %94 = vector.shape_cast %93 : vector<1x1x8xf32> to vector<1x8xf32>
    %95 = vector.broadcast %94 : vector<1x8xf32> to vector<8x8xf32>
    %96 = arith.addf %92, %95 : vector<8x8xf32>
    %97 = arith.truncf %96 : vector<8x8xf32> to vector<8x8xbf16>
    %c0_86 = arith.constant 0 : index
    %c2_87 = arith.constant 2 : index
    %c0_88 = arith.constant 0 : index
    %c0_89 = arith.constant 0 : index
    %98 = vector.load %arg4[%c0_86, %c2_87, %c0_88, %c0_89] : memref<1x4x8x8xbf16, #tpu.memory_space<vmem>>, vector<1x1x8x8xbf16>
    %99 = vector.shape_cast %98 : vector<1x1x8x8xbf16> to vector<8x8xbf16>
    %cst_90 = arith.constant dense<0.000000e+00> : vector<8x8xf32>
    %100 = tpu.matmul %97, %99, %cst_90 {dimension_numbers = #tpu.dot_dimension_numbers<[1], [0], [0], [1], [0, 0, 1, 1], [], []>} : vector<8x8xbf16>, vector<8x8xbf16>, vector<8x8xf32> -> vector<8x8xf32>
    %cst_91 = arith.constant dense<0xFF800000> : vector<8xf32>
    %101 = vector.multi_reduction <maximumf>, %100, %cst_91 [1] : vector<8x8xf32> to vector<8xf32>
    %102 = vector.shape_cast %101 : vector<8xf32> to vector<8x1xf32>
    %103 = vector.broadcast %102 : vector<8x1xf32> to vector<8x8xf32>
    %104 = arith.subf %100, %103 : vector<8x8xf32>
    %105 = math.exp %104 : vector<8x8xf32>
    %cst_92 = arith.constant dense<0.000000e+00> : vector<8xf32>
    %106 = vector.multi_reduction <add>, %105, %cst_92 [1] : vector<8x8xf32> to vector<8xf32>
    %107 = vector.shape_cast %106 : vector<8xf32> to vector<8x1xf32>
    %108 = tpu.reciprocal %107 : vector<8x1xf32> -> vector<8x1xf32>
    %109 = vector.broadcast %108 : vector<8x1xf32> to vector<8x8xf32>
    %110 = arith.mulf %105, %109 : vector<8x8xf32>
    %c2_93 = arith.constant 2 : index
    %c0_94 = arith.constant 0 : index
    %c0_95 = arith.constant 0 : index
    %c0_96 = arith.constant 0 : index
    %111 = vector.load %arg14[%c2_93, %c0_94, %c0_95, %c0_96] : memref<4x1x8x8xf32, #tpu.memory_space<vmem>>, vector<1x1x8x8xf32>
    %112 = vector.shape_cast %111 : vector<1x1x8x8xf32> to vector<8x8xf32>
    %113 = vector.shape_cast %110 : vector<8x8xf32> to vector<1x1x8x8xf32>
    tpu.vector_store %arg14[%c2_93, %c0_94, %c0_95, %c0_96], %113 {strides = array<i32>} : memref<4x1x8x8xf32, #tpu.memory_space<vmem>>, vector<1x1x8x8xf32>,
    %114 = arith.truncf %110 : vector<8x8xf32> to vector<8x8xbf16>
    %c0_97 = arith.constant 0 : index
    %c2_98 = arith.constant 2 : index
    %c0_99 = arith.constant 0 : index
    %c0_100 = arith.constant 0 : index
    %115 = vector.load %arg5[%c0_97, %c2_98, %c0_99, %c0_100] : memref<1x4x8x8xbf16, #tpu.memory_space<vmem>>, vector<1x1x8x8xbf16>
    %116 = vector.shape_cast %115 : vector<1x1x8x8xbf16> to vector<8x8xbf16>
    %cst_101 = arith.constant dense<0.000000e+00> : vector<8x8xf32>
    %117 = tpu.matmul %114, %116, %cst_101 {dimension_numbers = #tpu.dot_dimension_numbers<[1], [0], [0], [1], [0, 0, 1, 1], [], []>} : vector<8x8xbf16>, vector<8x8xbf16>, vector<8x8xf32> -> vector<8x8xf32>
    %c0_102 = arith.constant 0 : index
    %c0_103 = arith.constant 0 : index
    %118 = vector.load %arg15[%c0_102, %c0_103] : memref<8x32xf32, #tpu.memory_space<vmem>>, vector<8x32xf32>
    %119 = arith.truncf %117 : vector<8x8xf32> to vector<8x8xbf16>
    %c2_104 = arith.constant 2 : index
    %c0_105 = arith.constant 0 : index
    %c0_106 = arith.constant 0 : index
    %120 = vector.load %arg9[%c2_104, %c0_105, %c0_106] : memref<4x8x32xbf16, #tpu.memory_space<vmem>>, vector<1x8x32xbf16>
    %121 = vector.shape_cast %120 : vector<1x8x32xbf16> to vector<8x32xbf16>
    %cst_107 = arith.constant dense<0.000000e+00> : vector<8x32xf32>
    %122 = tpu.matmul %119, %121, %cst_107 {dimension_numbers = #tpu.dot_dimension_numbers<[1], [0], [0], [1], [0, 0, 1, 1], [], []>} : vector<8x8xbf16>, vector<8x32xbf16>, vector<8x32xf32> -> vector<8x32xf32>
    %123 = arith.addf %118, %122 : vector<8x32xf32>
    %c0_108 = arith.constant 0 : index
    %c0_109 = arith.constant 0 : index
    %124 = vector.load %arg15[%c0_108, %c0_109] : memref<8x32xf32, #tpu.memory_space<vmem>>, vector<8x32xf32>
    tpu.vector_store %arg15[%c0_108, %c0_109], %123 {strides = array<i32>} : memref<8x32xf32, #tpu.memory_space<vmem>>, vector<8x32xf32>,
    %c3 = arith.constant 3 : index
    %c0_110 = arith.constant 0 : index
    %c0_111 = arith.constant 0 : index
    %125 = vector.load %arg6[%c3, %c0_110, %c0_111] : memref<4x32x8xbf16, #tpu.memory_space<vmem>>, vector<1x32x8xbf16>
    %126 = vector.shape_cast %125 : vector<1x32x8xbf16> to vector<32x8xbf16>
    %cst_112 = arith.constant dense<0.000000e+00> : vector<8x8xf32>
    %127 = tpu.matmul %2, %126, %cst_112 {dimension_numbers = #tpu.dot_dimension_numbers<[1], [0], [0], [1], [0, 0, 1, 1], [], []>} : vector<8x32xbf16>, vector<32x8xbf16>, vector<8x8xf32> -> vector<8x8xf32>
    %c3_113 = arith.constant 3 : index
    %c0_114 = arith.constant 0 : index
    %c0_115 = arith.constant 0 : index
    %128 = vector.load %arg7[%c3_113, %c0_114, %c0_115] : memref<4x96x8xbf16, #tpu.memory_space<vmem>>, vector<1x96x8xbf16>
    %129 = vector.shape_cast %128 : vector<1x96x8xbf16> to vector<96x8xbf16>
    %cst_116 = arith.constant dense<0.000000e+00> : vector<8x8xf32>
    %130 = tpu.matmul %5, %129, %cst_116 {dimension_numbers = #tpu.dot_dimension_numbers<[1], [0], [0], [1], [0, 0, 1, 1], [], []>} : vector<8x96xbf16>, vector<96x8xbf16>, vector<8x8xf32> -> vector<8x8xf32>
    %131 = arith.addf %127, %130 : vector<8x8xf32>
    %c3_117 = arith.constant 3 : index
    %c0_118 = arith.constant 0 : index
    %c0_119 = arith.constant 0 : index
    %132 = vector.load %arg8[%c3_117, %c0_118, %c0_119] : memref<4x1x8xf32, #tpu.memory_space<vmem>>, vector<1x1x8xf32>
    %133 = vector.shape_cast %132 : vector<1x1x8xf32> to vector<1x8xf32>
    %134 = vector.broadcast %133 : vector<1x8xf32> to vector<8x8xf32>
    %135 = arith.addf %131, %134 : vector<8x8xf32>
    %136 = arith.truncf %135 : vector<8x8xf32> to vector<8x8xbf16>
    %c0_120 = arith.constant 0 : index
    %c3_121 = arith.constant 3 : index
    %c0_122 = arith.constant 0 : index
    %c0_123 = arith.constant 0 : index
    %137 = vector.load %arg4[%c0_120, %c3_121, %c0_122, %c0_123] : memref<1x4x8x8xbf16, #tpu.memory_space<vmem>>, vector<1x1x8x8xbf16>
    %138 = vector.shape_cast %137 : vector<1x1x8x8xbf16> to vector<8x8xbf16>
    %cst_124 = arith.constant dense<0.000000e+00> : vector<8x8xf32>
    %139 = tpu.matmul %136, %138, %cst_124 {dimension_numbers = #tpu.dot_dimension_numbers<[1], [0], [0], [1], [0, 0, 1, 1], [], []>} : vector<8x8xbf16>, vector<8x8xbf16>, vector<8x8xf32> -> vector<8x8xf32>
    %cst_125 = arith.constant dense<0xFF800000> : vector<8xf32>
    %140 = vector.multi_reduction <maximumf>, %139, %cst_125 [1] : vector<8x8xf32> to vector<8xf32>
    %141 = vector.shape_cast %140 : vector<8xf32> to vector<8x1xf32>
    %142 = vector.broadcast %141 : vector<8x1xf32> to vector<8x8xf32>
    %143 = arith.subf %139, %142 : vector<8x8xf32>
    %144 = math.exp %143 : vector<8x8xf32>
    %cst_126 = arith.constant dense<0.000000e+00> : vector<8xf32>
    %145 = vector.multi_reduction <add>, %144, %cst_126 [1] : vector<8x8xf32> to vector<8xf32>
    %146 = vector.shape_cast %145 : vector<8xf32> to vector<8x1xf32>
    %147 = tpu.reciprocal %146 : vector<8x1xf32> -> vector<8x1xf32>
    %148 = vector.broadcast %147 : vector<8x1xf32> to vector<8x8xf32>
    %149 = arith.mulf %144, %148 : vector<8x8xf32>
    %c3_127 = arith.constant 3 : index
    %c0_128 = arith.constant 0 : index
    %c0_129 = arith.constant 0 : index
    %c0_130 = arith.constant 0 : index
    %150 = vector.load %arg14[%c3_127, %c0_128, %c0_129, %c0_130] : memref<4x1x8x8xf32, #tpu.memory_space<vmem>>, vector<1x1x8x8xf32>
    %151 = vector.shape_cast %150 : vector<1x1x8x8xf32> to vector<8x8xf32>
    %152 = vector.shape_cast %149 : vector<8x8xf32> to vector<1x1x8x8xf32>
    tpu.vector_store %arg14[%c3_127, %c0_128, %c0_129, %c0_130], %152 {strides = array<i32>} : memref<4x1x8x8xf32, #tpu.memory_space<vmem>>, vector<1x1x8x8xf32>,
    %153 = arith.truncf %149 : vector<8x8xf32> to vector<8x8xbf16>
    %c0_131 = arith.constant 0 : index
    %c3_132 = arith.constant 3 : index
    %c0_133 = arith.constant 0 : index
    %c0_134 = arith.constant 0 : index
    %154 = vector.load %arg5[%c0_131, %c3_132, %c0_133, %c0_134] : memref<1x4x8x8xbf16, #tpu.memory_space<vmem>>, vector<1x1x8x8xbf16>
    %155 = vector.shape_cast %154 : vector<1x1x8x8xbf16> to vector<8x8xbf16>
    %cst_135 = arith.constant dense<0.000000e+00> : vector<8x8xf32>
    %156 = tpu.matmul %153, %155, %cst_135 {dimension_numbers = #tpu.dot_dimension_numbers<[1], [0], [0], [1], [0, 0, 1, 1], [], []>} : vector<8x8xbf16>, vector<8x8xbf16>, vector<8x8xf32> -> vector<8x8xf32>
    %c0_136 = arith.constant 0 : index
    %c0_137 = arith.constant 0 : index
    %157 = vector.load %arg15[%c0_136, %c0_137] : memref<8x32xf32, #tpu.memory_space<vmem>>, vector<8x32xf32>
    %158 = arith.truncf %156 : vector<8x8xf32> to vector<8x8xbf16>
    %c3_138 = arith.constant 3 : index
    %c0_139 = arith.constant 0 : index
    %c0_140 = arith.constant 0 : index
    %159 = vector.load %arg9[%c3_138, %c0_139, %c0_140] : memref<4x8x32xbf16, #tpu.memory_space<vmem>>, vector<1x8x32xbf16>
    %160 = vector.shape_cast %159 : vector<1x8x32xbf16> to vector<8x32xbf16>
    %cst_141 = arith.constant dense<0.000000e+00> : vector<8x32xf32>
    %161 = tpu.matmul %158, %160, %cst_141 {dimension_numbers = #tpu.dot_dimension_numbers<[1], [0], [0], [1], [0, 0, 1, 1], [], []>} : vector<8x8xbf16>, vector<8x32xbf16>, vector<8x32xf32> -> vector<8x32xf32>
    %162 = arith.addf %157, %161 : vector<8x32xf32>
    %c0_142 = arith.constant 0 : index
    %c0_143 = arith.constant 0 : index
    %163 = vector.load %arg15[%c0_142, %c0_143] : memref<8x32xf32, #tpu.memory_space<vmem>>, vector<8x32xf32>
    tpu.vector_store %arg15[%c0_142, %c0_143], %162 {strides = array<i32>} : memref<8x32xf32, #tpu.memory_space<vmem>>, vector<8x32xf32>,
    %c0_144 = arith.constant 0 : index
    %c0_145 = arith.constant 0 : index
    %164 = vector.load %arg15[%c0_144, %c0_145] : memref<8x32xf32, #tpu.memory_space<vmem>>, vector<8x32xf32>
    %165 = arith.addf %1, %164 : vector<8x32xf32>
    %c0_146 = arith.constant 0 : index
    %c0_147 = arith.constant 0 : index
    %166 = vector.load %arg10[%c0_146, %c0_147] : memref<1x32xf32, #tpu.memory_space<vmem>>, vector<1x32xf32>
    %167 = vector.broadcast %166 : vector<1x32xf32> to vector<8x32xf32>
    %168 = arith.addf %165, %167 : vector<8x32xf32>
    %cst_148 = arith.constant dense<0.000000e+00> : vector<8xf32>
    %169 = vector.multi_reduction <add>, %168, %cst_148 [1] : vector<8x32xf32> to vector<8xf32>
    %170 = vector.shape_cast %169 : vector<8xf32> to vector<8x1xf32>
    %cst_149 = arith.constant 3.200000e+01 : f32
    %171 = vector.broadcast %cst_149 : f32 to vector<8x1xf32>
    %172 = arith.divf %170, %171 : vector<8x1xf32>
    %173 = vector.broadcast %172 : vector<8x1xf32> to vector<8x32xf32>
    %174 = arith.subf %168, %173 : vector<8x32xf32>
    %175 = arith.mulf %174, %174 : vector<8x32xf32>
    %cst_150 = arith.constant dense<0.000000e+00> : vector<8xf32>
    %176 = vector.multi_reduction <add>, %175, %cst_150 [1] : vector<8x32xf32> to vector<8xf32>
    %177 = vector.shape_cast %176 : vector<8xf32> to vector<8x1xf32>
    %cst_151 = arith.constant 3.200000e+01 : f32
    %178 = vector.broadcast %cst_151 : f32 to vector<8x1xf32>
    %179 = arith.divf %177, %178 : vector<8x1xf32>
    %cst_152 = arith.constant 9.99999974E-6 : f32
    %180 = vector.broadcast %cst_152 : f32 to vector<8x1xf32>
    %181 = arith.addf %179, %180 : vector<8x1xf32>
    %182 = math.rsqrt %181 : vector<8x1xf32>
    %183 = vector.broadcast %182 : vector<8x1xf32> to vector<8x32xf32>
    %184 = arith.mulf %174, %183 : vector<8x32xf32>
    %c0_153 = arith.constant 0 : index
    %c0_154 = arith.constant 0 : index
    %185 = vector.load %arg11[%c0_153, %c0_154] : memref<1x32xf32, #tpu.memory_space<vmem>>, vector<1x32xf32>
    %186 = vector.broadcast %185 : vector<1x32xf32> to vector<8x32xf32>
    %187 = arith.mulf %184, %186 : vector<8x32xf32>
    %c0_155 = arith.constant 0 : index
    %c0_156 = arith.constant 0 : index
    %188 = vector.load %arg12[%c0_155, %c0_156] : memref<1x32xf32, #tpu.memory_space<vmem>>, vector<1x32xf32>
    %189 = vector.broadcast %188 : vector<1x32xf32> to vector<8x32xf32>
    %190 = arith.addf %187, %189 : vector<8x32xf32>
    %c0_157 = arith.constant 0 : index
    %c0_158 = arith.constant 0 : index
    %c0_159 = arith.constant 0 : index
    %191 = vector.load %arg13[%c0_157, %c0_158, %c0_159] : memref<1x8x32xf32, #tpu.memory_space<vmem>>, vector<1x8x32xf32>
    %192 = vector.shape_cast %191 : vector<1x8x32xf32> to vector<8x32xf32>
    %193 = vector.shape_cast %190 : vector<8x32xf32> to vector<1x8x32xf32>
    tpu.vector_store %arg13[%c0_157, %c0_158, %c0_159], %193 {strides = array<i32>} : memref<1x8x32xf32, #tpu.memory_space<vmem>>, vector<1x8x32xf32>,
    return
  }
  func.func @transform_0(%arg0: i32, %arg1: i32) -> (i32, i32, i32) {
    %c0_i32 = arith.constant 0 : i32
    %c0_i32_0 = arith.constant 0 : i32
    return %arg0, %arg1, %c0_i32 : i32, i32, i32
  }
  func.func @transform_1(%arg0: i32, %arg1: i32) -> (i32, i32, i32) {
    %c0_i32 = arith.constant 0 : i32
    %c0_i32_0 = arith.constant 0 : i32
    return %arg0, %arg1, %c0_i32 : i32, i32, i32
  }
  func.func @transform_2(%arg0: i32, %arg1: i32) -> (i32, i32, i32, i32) {
    %c0_i32 = arith.constant 0 : i32
    %c0_i32_0 = arith.constant 0 : i32
    %c0_i32_1 = arith.constant 0 : i32
    %c0_i32_2 = arith.constant 0 : i32
    return %arg0, %c0_i32, %c0_i32_0, %c0_i32_1 : i32, i32, i32, i32
  }
  func.func @transform_3(%arg0: i32, %arg1: i32) -> (i32, i32, i32, i32) {
    %c0_i32 = arith.constant 0 : i32
    %c0_i32_0 = arith.constant 0 : i32
    %c0_i32_1 = arith.constant 0 : i32
    %c0_i32_2 = arith.constant 0 : i32
    return %arg0, %c0_i32, %c0_i32_0, %c0_i32_1 : i32, i32, i32, i32
  }
  func.func @transform_4(%arg0: i32, %arg1: i32) -> (i32, i32, i32) {
    %c0_i32 = arith.constant 0 : i32
    %c0_i32_0 = arith.constant 0 : i32
    %c0_i32_1 = arith.constant 0 : i32
    %c0_i32_2 = arith.constant 0 : i32
    return %c0_i32, %c0_i32_0, %c0_i32_1 : i32, i32, i32
  }
  func.func @transform_5(%arg0: i32, %arg1: i32) -> (i32, i32, i32) {
    %c0_i32 = arith.constant 0 : i32
    %c0_i32_0 = arith.constant 0 : i32
    %c0_i32_1 = arith.constant 0 : i32
    %c0_i32_2 = arith.constant 0 : i32
    return %c0_i32, %c0_i32_0, %c0_i32_1 : i32, i32, i32
  }
  func.func @transform_6(%arg0: i32, %arg1: i32) -> (i32, i32, i32) {
    %c0_i32 = arith.constant 0 : i32
    %c0_i32_0 = arith.constant 0 : i32
    %c0_i32_1 = arith.constant 0 : i32
    %c0_i32_2 = arith.constant 0 : i32
    return %c0_i32, %c0_i32_0, %c0_i32_1 : i32, i32, i32
  }
  func.func @transform_7(%arg0: i32, %arg1: i32) -> (i32, i32, i32) {
    %c0_i32 = arith.constant 0 : i32
    %c0_i32_0 = arith.constant 0 : i32
    %c0_i32_1 = arith.constant 0 : i32
    %c0_i32_2 = arith.constant 0 : i32
    return %c0_i32, %c0_i32_0, %c0_i32_1 : i32, i32, i32
  }
  func.func @transform_8(%arg0: i32, %arg1: i32) -> (i32, i32) {
    %c0_i32 = arith.constant 0 : i32
    %c0_i32_0 = arith.constant 0 : i32
    %c0_i32_1 = arith.constant 0 : i32
    return %c0_i32, %c0_i32_0 : i32, i32
  }
  func.func @transform_9(%arg0: i32, %arg1: i32) -> (i32, i32) {
    %c0_i32 = arith.constant 0 : i32
    %c0_i32_0 = arith.constant 0 : i32
    %c0_i32_1 = arith.constant 0 : i32
    return %c0_i32, %c0_i32_0 : i32, i32
  }
  func.func @transform_10(%arg0: i32, %arg1: i32) -> (i32, i32) {
    %c0_i32 = arith.constant 0 : i32
    %c0_i32_0 = arith.constant 0 : i32
    %c0_i32_1 = arith.constant 0 : i32
    return %c0_i32, %c0_i32_0 : i32, i32
  }
  func.func @transform_11(%arg0: i32, %arg1: i32) -> (i32, i32, i32) {
    %c0_i32 = arith.constant 0 : i32
    %c0_i32_0 = arith.constant 0 : i32
    return %arg0, %arg1, %c0_i32 : i32, i32, i32
  }
  func.func @transform_12(%arg0: i32, %arg1: i32) -> (i32, i32, i32, i32) {
    %c0_i32 = arith.constant 0 : i32
    %c0_i32_0 = arith.constant 0 : i32
    %c0_i32_1 = arith.constant 0 : i32
    return %c0_i32, %arg0, %arg1, %c0_i32_0 : i32, i32, i32, i32
  }
}

</mosaic_0001>

<llo_original>
// kernel: tpu_custom_call.1
$region0: #{tpu_custom_call.1}
  #allocation0 [shape = 'u32[]', space=smem, size = 0x4, offset = 0x4, fixed_abs, tag = 'smem constant byte address 0x4 - core index']
  #allocation1 [shape = 'u32[144,128]{1,0:T(1,128)}', space=vmem, size = 0x12000, scoped, tag = 'internal scratch']
  #allocation2 [shape = 'f32[8,32]{1,0:T(8,128)}', space=vmem, size = 0x1000, scoped, tag = 'scratch operand']
  %s0 = inlined_call_operand.vmem [shape: f32[2,8,32], index: 0, kind: input, shape index: {}]
  %s1 = inlined_call_operand.vmem [shape: f32[2,8,96], index: 1, kind: input, shape index: {}]
  %s2 = inlined_call_operand.vmem [shape: bf16[2,4,8,8], index: 2, kind: input, shape index: {}]
  %s3 = inlined_call_operand.vmem [shape: bf16[2,4,8,8], index: 3, kind: input, shape index: {}]
  %s4 = inlined_call_operand.vmem [shape: bf16[4,32,8], index: 4, kind: input, shape index: {}]
  %s5 = inlined_call_operand.vmem [shape: bf16[4,96,8], index: 5, kind: input, shape index: {}]
  %s6 = inlined_call_operand.vmem [shape: f32[4,1,8], index: 6, kind: input, shape index: {}]
  %s7 = inlined_call_operand.vmem [shape: bf16[4,8,32], index: 7, kind: input, shape index: {}]
  %s8 = inlined_call_operand.vmem [shape: f32[1,32], index: 8, kind: input, shape index: {}]
  %s9 = inlined_call_operand.vmem [shape: f32[1,32], index: 9, kind: input, shape index: {}]
  %s10 = inlined_call_operand.vmem [shape: f32[1,32], index: 10, kind: input, shape index: {}]
  %s11 = inlined_call_operand.hbm [shape: f32[2,8,32], index: 11, kind: output, shape index: {0}]
  %s12 = inlined_call_operand.hbm [shape: f32[4,2,8,8], index: 12, kind: output, shape index: {1}]
  %13 = xla_tuple %s11, %s12
  %s14 = sld [smem:[#allocation0]]
  $region85: #{tpu_custom_call.1} parent=0
    _
  %s16 = ssub.s32 1, %s14
  %s17 = scalar_select 0, %s16, %s14
  $region1: #{tpu_custom_call.1} parent=0
    #allocation3 [shape = 'u8[8192]{0}', space=vmem, size = 0x2000, scoped, tag = 'output window, operand 0']
    #allocation4 [shape = 's32[2]{0}', space=sflag, size = 0x8, scoped, tag = 'scoped memory for tpu_custom_call.1']
    #allocation5 [shape = 'u8[32768]{0}', space=vmem, size = 0x8000, scoped, tag = 'output window, operand 1']
    #allocation6 [shape = 's32[2]{0}', space=sflag, size = 0x8, scoped, tag = 'scoped memory for tpu_custom_call.1']
    %18 = vsyncpa [#allocation4], 0
    %s19 = scalar_lea.sflag [#allocation4], 1
    %20 = vsyncpa %s19, 0
    %21 = vsyncpa [#allocation6], 0
    %s22 = scalar_lea.sflag [#allocation6], 1
    %23 = vsyncpa %s22, 0
    loop: start=0, step=1, limit=4
    $region2: #{tpu_custom_call.1} parent=1 // loop_pre_header
      _
    $region3: #{tpu_custom_call.1} parent=1 // loop_header
      %s25 = sphi 0, %s29
      %p26 = scmp.ge.s32.totalorder %s25, 4
      %s32 = sphi 0, %s44
      %s33 = sphi 0, %s40
      %s34 = sphi 0, %s32
      %s35 = sphi 0, %s33
      %s36 = sphi 0, %s34
      %s37 = sphi 0, %s35
      %s49 = sphi 0, %s51
      %s52 = sphi 0, %s49
      %s53 = sphi 0, %s52
      %s69 = sphi 0, %s53
      %s77 = sphi 0, %s79
      %s80 = sphi 0, %s77
      %s81 = sphi 0, %s80
      %s97 = sphi 0, %s81
      %s103 = sphi 0, %s105
      %s106 = sphi 0, %s103
      %s107 = sphi 0, %s106
      %s123 = sphi 0, %s107
      %s129 = sphi 0, %s131
      %s132 = sphi 0, %s129
      %s133 = sphi 0, %s132
      %s149 = sphi 0, %s133
      %s153 = sphi 0, %s153
      %s155 = sphi 0, %s153
      %s156 = sphi 0, %s155
      %s170 = sphi 0, %s156
      %s174 = sphi 0, %s174
      %s176 = sphi 0, %s174
      %s177 = sphi 0, %s176
      %s191 = sphi 0, %s177
      %s195 = sphi 0, %s195
      %s197 = sphi 0, %s195
      %s198 = sphi 0, %s197
      %s212 = sphi 0, %s198
      %s216 = sphi 0, %s216
      %s218 = sphi 0, %s216
      %s219 = sphi 0, %s218
      %s233 = sphi 0, %s219
      %s237 = sphi 0, %s237
      %s239 = sphi 0, %s237
      %s240 = sphi 0, %s239
      %s254 = sphi 0, %s240
      %s258 = sphi 0, %s258
      %s260 = sphi 0, %s258
      %s261 = sphi 0, %s260
      %s275 = sphi 0, %s261
      %s279 = sphi 0, %s279
      %s281 = sphi 0, %s279
      %s282 = sphi 0, %s281
      %s296 = sphi 0, %s282
      %s304 = sphi 0, %s306
      %s307 = sphi 0, %s304
      %s308 = sphi 0, %s307
      %s324 = sphi 0, %s308
      %s332 = sphi 0, %s334
      %s335 = sphi 0, %s332
      %s336 = sphi 0, %s335
      %s352 = sphi 0, %s336
    $region4: #{tpu_custom_call.1} parent=1 // loop_header_branch
      %28 = sbr.rel (%p26) target = $region8
    $region5: #{tpu_custom_call.1} parent=1 // loop_body
      %s30 = ssub.s32 %s25, 1
      %s31 = ssub.s32 %s25, 2
      %s38 = sadd.s32 1, %s33
      %p39 = scmp.ge.s32.totalorder %s38, 1
      %s40 = scalar_select %p39, 0, %s38
      %s41 = sadd.s32 1, %s32
      %s42 = scalar_select %p39, %s41, %s32
      %p43 = scmp.ge.s32.totalorder %s42, 2
      %s44 = scalar_select %p43, 0, %s42
      %s45 = ssub.s32 %s32, %s44
      %s46 = ssub.s32 %s33, %s40
      %s47 = sor.u32 %s45, %s46
      %p48 = scmp.eq.s32.totalorder %s47, 0
      %s50 = sadd.s32 %s49, 1
      %s51 = scalar_select %p48, %s49, %s50
      %p54 = pneg %p48
      %p55 = scmp.eq.s32.totalorder %s25, 1
      %p56 = por %p54, %p55
      %p57 = scmp.ne.s32.totalorder %s49, %s52
      %p58 = scmp.eq.s32.totalorder %s25, 0
      %p59 = por %p57, %p58
      %p60 = scmp.ne.s32.totalorder %s49, %s52
      %p61 = scmp.eq.s32.totalorder %s30, 1
      %p62 = por %p60, %p61
      %p63 = scmp.ne.s32.totalorder %s52, %s53
      %p64 = scmp.eq.s32.totalorder %s30, 0
      %p65 = por %p63, %p64
      %p66 = scmp.ne.s32.totalorder %s52, %s53
      %p67 = scmp.eq.s32.totalorder %s31, 1
      %p68 = por %p66, %p67
      %p70 = scmp.ne.s32.totalorder %s53, %s69
      %p71 = scmp.eq.s32.totalorder %s31, 0
      %p72 = por %p70, %p71
      %s73 = ssub.s32 %s32, %s44
      %s74 = ssub.s32 %s33, %s40
      %s75 = sor.u32 %s73, %s74
      %p76 = scmp.eq.s32.totalorder %s75, 0
      %s78 = sadd.s32 %s77, 1
      %s79 = scalar_select %p76, %s77, %s78
      %p82 = pneg %p76
      %p83 = scmp.eq.s32.totalorder %s25, 1
      %p84 = por %p82, %p83
      %p85 = scmp.ne.s32.totalorder %s77, %s80
      %p86 = scmp.eq.s32.totalorder %s25, 0
      %p87 = por %p85, %p86
      %p88 = scmp.ne.s32.totalorder %s77, %s80
      %p89 = scmp.eq.s32.totalorder %s30, 1
      %p90 = por %p88, %p89
      %p91 = scmp.ne.s32.totalorder %s80, %s81
      %p92 = scmp.eq.s32.totalorder %s30, 0
      %p93 = por %p91, %p92
      %p94 = scmp.ne.s32.totalorder %s80, %s81
      %p95 = scmp.eq.s32.totalorder %s31, 1
      %p96 = por %p94, %p95
      %p98 = scmp.ne.s32.totalorder %s81, %s97
      %p99 = scmp.eq.s32.totalorder %s31, 0
      %p100 = por %p98, %p99
      %s101 = ssub.s32 %s32, %s44
      %p102 = scmp.eq.s32.totalorder %s101, 0
      %s104 = sadd.s32 %s103, 1
      %s105 = scalar_select %p102, %s103, %s104
      %p108 = pneg %p102
      %p109 = scmp.eq.s32.totalorder %s25, 1
      %p110 = por %p108, %p109
      %p111 = scmp.ne.s32.totalorder %s103, %s106
      %p112 = scmp.eq.s32.totalorder %s25, 0
      %p113 = por %p111, %p112
      %p114 = scmp.ne.s32.totalorder %s103, %s106
      %p115 = scmp.eq.s32.totalorder %s30, 1
      %p116 = por %p114, %p115
      %p117 = scmp.ne.s32.totalorder %s106, %s107
      %p118 = scmp.eq.s32.totalorder %s30, 0
      %p119 = por %p117, %p118
      %p120 = scmp.ne.s32.totalorder %s106, %s107
      %p121 = scmp.eq.s32.totalorder %s31, 1
      %p122 = por %p120, %p121
      %p124 = scmp.ne.s32.totalorder %s107, %s123
      %p125 = scmp.eq.s32.totalorder %s31, 0
      %p126 = por %p124, %p125
      %s127 = ssub.s32 %s32, %s44
      %p128 = scmp.eq.s32.totalorder %s127, 0
      %s130 = sadd.s32 %s129, 1
      %s131 = scalar_select %p128, %s129, %s130
      %p134 = pneg %p128
      %p135 = scmp.eq.s32.totalorder %s25, 1
      %p136 = por %p134, %p135
      %p137 = scmp.ne.s32.totalorder %s129, %s132
      %p138 = scmp.eq.s32.totalorder %s25, 0
      %p139 = por %p137, %p138
      %p140 = scmp.ne.s32.totalorder %s129, %s132
      %p141 = scmp.eq.s32.totalorder %s30, 1
      %p142 = por %p140, %p141
      %p143 = scmp.ne.s32.totalorder %s132, %s133
      %p144 = scmp.eq.s32.totalorder %s30, 0
      %p145 = por %p143, %p144
      %p146 = scmp.ne.s32.totalorder %s132, %s133
      %p147 = scmp.eq.s32.totalorder %s31, 1
      %p148 = por %p146, %p147
      %p150 = scmp.ne.s32.totalorder %s133, %s149
      %p151 = scmp.eq.s32.totalorder %s31, 0
      %p152 = por %p150, %p151
      %s154 = sadd.s32 %s153, 1
      %p157 = scmp.eq.s32.totalorder %s25, 1
      %p158 = scmp.ne.s32.totalorder %s153, %s155
      %p159 = scmp.eq.s32.totalorder %s25, 0
      %p160 = por %p158, %p159
      %p161 = scmp.ne.s32.totalorder %s153, %s155
      %p162 = scmp.eq.s32.totalorder %s30, 1
      %p163 = por %p161, %p162
      %p164 = scmp.ne.s32.totalorder %s155, %s156
      %p165 = scmp.eq.s32.totalorder %s30, 0
      %p166 = por %p164, %p165
      %p167 = scmp.ne.s32.totalorder %s155, %s156
      %p168 = scmp.eq.s32.totalorder %s31, 1
      %p169 = por %p167, %p168
      %p171 = scmp.ne.s32.totalorder %s156, %s170
      %p172 = scmp.eq.s32.totalorder %s31, 0
      %p173 = por %p171, %p172
      %s175 = sadd.s32 %s174, 1
      %p178 = scmp.eq.s32.totalorder %s25, 1
      %p179 = scmp.ne.s32.totalorder %s174, %s176
      %p180 = scmp.eq.s32.totalorder %s25, 0
      %p181 = por %p179, %p180
      %p182 = scmp.ne.s32.totalorder %s174, %s176
      %p183 = scmp.eq.s32.totalorder %s30, 1
      %p184 = por %p182, %p183
      %p185 = scmp.ne.s32.totalorder %s176, %s177
      %p186 = scmp.eq.s32.totalorder %s30, 0
      %p187 = por %p185, %p186
      %p188 = scmp.ne.s32.totalorder %s176, %s177
      %p189 = scmp.eq.s32.totalorder %s31, 1
      %p190 = por %p188, %p189
      %p192 = scmp.ne.s32.totalorder %s177, %s191
      %p193 = scmp.eq.s32.totalorder %s31, 0
      %p194 = por %p192, %p193
      %s196 = sadd.s32 %s195, 1
      %p199 = scmp.eq.s32.totalorder %s25, 1
      %p200 = scmp.ne.s32.totalorder %s195, %s197
      %p201 = scmp.eq.s32.totalorder %s25, 0
      %p202 = por %p200, %p201
      %p203 = scmp.ne.s32.totalorder %s195, %s197
      %p204 = scmp.eq.s32.totalorder %s30, 1
      %p205 = por %p203, %p204
      %p206 = scmp.ne.s32.totalorder %s197, %s198
      %p207 = scmp.eq.s32.totalorder %s30, 0
      %p208 = por %p206, %p207
      %p209 = scmp.ne.s32.totalorder %s197, %s198
      %p210 = scmp.eq.s32.totalorder %s31, 1
      %p211 = por %p209, %p210
      %p213 = scmp.ne.s32.totalorder %s198, %s212
      %p214 = scmp.eq.s32.totalorder %s31, 0
      %p215 = por %p213, %p214
      %s217 = sadd.s32 %s216, 1
      %p220 = scmp.eq.s32.totalorder %s25, 1
      %p221 = scmp.ne.s32.totalorder %s216, %s218
      %p222 = scmp.eq.s32.totalorder %s25, 0
      %p223 = por %p221, %p222
      %p224 = scmp.ne.s32.totalorder %s216, %s218
      %p225 = scmp.eq.s32.totalorder %s30, 1
      %p226 = por %p224, %p225
      %p227 = scmp.ne.s32.totalorder %s218, %s219
      %p228 = scmp.eq.s32.totalorder %s30, 0
      %p229 = por %p227, %p228
      %p230 = scmp.ne.s32.totalorder %s218, %s219
      %p231 = scmp.eq.s32.totalorder %s31, 1
      %p232 = por %p230, %p231
      %p234 = scmp.ne.s32.totalorder %s219, %s233
      %p235 = scmp.eq.s32.totalorder %s31, 0
      %p236 = por %p234, %p235
      %s238 = sadd.s32 %s237, 1
      %p241 = scmp.eq.s32.totalorder %s25, 1
      %p242 = scmp.ne.s32.totalorder %s237, %s239
      %p243 = scmp.eq.s32.totalorder %s25, 0
      %p244 = por %p242, %p243
      %p245 = scmp.ne.s32.totalorder %s237, %s239
      %p246 = scmp.eq.s32.totalorder %s30, 1
      %p247 = por %p245, %p246
      %p248 = scmp.ne.s32.totalorder %s239, %s240
      %p249 = scmp.eq.s32.totalorder %s30, 0
      %p250 = por %p248, %p249
      %p251 = scmp.ne.s32.totalorder %s239, %s240
      %p252 = scmp.eq.s32.totalorder %s31, 1
      %p253 = por %p251, %p252
      %p255 = scmp.ne.s32.totalorder %s240, %s254
      %p256 = scmp.eq.s32.totalorder %s31, 0
      %p257 = por %p255, %p256
      %s259 = sadd.s32 %s258, 1
      %p262 = scmp.eq.s32.totalorder %s25, 1
      %p263 = scmp.ne.s32.totalorder %s258, %s260
      %p264 = scmp.eq.s32.totalorder %s25, 0
      %p265 = por %p263, %p264
      %p266 = scmp.ne.s32.totalorder %s258, %s260
      %p267 = scmp.eq.s32.totalorder %s30, 1
      %p268 = por %p266, %p267
      %p269 = scmp.ne.s32.totalorder %s260, %s261
      %p270 = scmp.eq.s32.totalorder %s30, 0
      %p271 = por %p269, %p270
      %p272 = scmp.ne.s32.totalorder %s260, %s261
      %p273 = scmp.eq.s32.totalorder %s31, 1
      %p274 = por %p272, %p273
      %p276 = scmp.ne.s32.totalorder %s261, %s275
      %p277 = scmp.eq.s32.totalorder %s31, 0
      %p278 = por %p276, %p277
      %s280 = sadd.s32 %s279, 1
      %p283 = scmp.eq.s32.totalorder %s25, 1
      %p284 = scmp.ne.s32.totalorder %s279, %s281
      %p285 = scmp.eq.s32.totalorder %s25, 0
      %p286 = por %p284, %p285
      %p287 = scmp.ne.s32.totalorder %s279, %s281
      %p288 = scmp.eq.s32.totalorder %s30, 1
      %p289 = por %p287, %p288
      %p290 = scmp.ne.s32.totalorder %s281, %s282
      %p291 = scmp.eq.s32.totalorder %s30, 0
      %p292 = por %p290, %p291
      %p293 = scmp.ne.s32.totalorder %s281, %s282
      %p294 = scmp.eq.s32.totalorder %s31, 1
      %p295 = por %p293, %p294
      %p297 = scmp.ne.s32.totalorder %s282, %s296
      %p298 = scmp.eq.s32.totalorder %s31, 0
      %p299 = por %p297, %p298
      %s300 = ssub.s32 %s32, %s44
      %s301 = ssub.s32 %s33, %s40
      %s302 = sor.u32 %s300, %s301
      %p303 = scmp.eq.s32.totalorder %s302, 0
      %s305 = sadd.s32 %s304, 1
      %s306 = scalar_select %p303, %s304, %s305
      %p309 = pneg %p303
      %p310 = scmp.eq.s32.totalorder %s25, 1
      %p311 = por %p309, %p310
      %p312 = scmp.ne.s32.totalorder %s304, %s307
      %p313 = scmp.eq.s32.totalorder %s25, 0
      %p314 = por %p312, %p313
      %p315 = scmp.ne.s32.totalorder %s304, %s307
      %p316 = scmp.eq.s32.totalorder %s30, 1
      %p317 = por %p315, %p316
      %p318 = scmp.ne.s32.totalorder %s307, %s308
      %p319 = scmp.eq.s32.totalorder %s30, 0
      %p320 = por %p318, %p319
      %p321 = scmp.ne.s32.totalorder %s307, %s308
      %p322 = scmp.eq.s32.totalorder %s31, 1
      %p323 = por %p321, %p322
      %p325 = scmp.ne.s32.totalorder %s308, %s324
      %p326 = scmp.eq.s32.totalorder %s31, 0
      %p327 = por %p325, %p326
      %s328 = ssub.s32 %s32, %s44
      %s329 = ssub.s32 %s33, %s40
      %s330 = sor.u32 %s328, %s329
      %p331 = scmp.eq.s32.totalorder %s330, 0
      %s333 = sadd.s32 %s332, 1
      %s334 = scalar_select %p331, %s332, %s333
      %p337 = pneg %p331
      %p338 = scmp.eq.s32.totalorder %s25, 1
      %p339 = por %p337, %p338
      %p340 = scmp.ne.s32.totalorder %s332, %s335
      %p341 = scmp.eq.s32.totalorder %s25, 0
      %p342 = por %p340, %p341
      %p343 = scmp.ne.s32.totalorder %s332, %s335
      %p344 = scmp.eq.s32.totalorder %s30, 1
      %p345 = por %p343, %p344
      %p346 = scmp.ne.s32.totalorder %s335, %s336
      %p347 = scmp.eq.s32.totalorder %s30, 0
      %p348 = por %p346, %p347
      %p349 = scmp.ne.s32.totalorder %s335, %s336
      %p350 = scmp.eq.s32.totalorder %s31, 1
      %p351 = por %p349, %p350
      %p353 = scmp.ne.s32.totalorder %s336, %s352
      %p354 = scmp.eq.s32.totalorder %s31, 0
      %p355 = por %p353, %p354
      %p356 = scmp.le.s32.totalorder 1, %s25
      %p357 = scmp.lt.s32.totalorder %s25, 3
      %p358 = pnand %p356, %p357
      %p359 = pneg %p358
      // Predicated region
      $region9: #{tpu_custom_call.1} parent=5 // pred_check
        _
      $region10: #{tpu_custom_call.1} parent=5 // pred_check_branch
        %361 = sbr.rel (%p358) target = $region12
      $region11: #{tpu_custom_call.1} parent=5 // pred_region
        %s362 = ssub.s32 %s25, 1
        // Predicated region
        $region13: #{tpu_custom_call.1} parent=11 // pred_check
          %p363 = pneg %p166
        $region14: #{tpu_custom_call.1} parent=11 // pred_check_branch
          %365 = sbr.rel (%p363) target = $region16
        $region15: #{tpu_custom_call.1} parent=11 // pred_region
          _
        $region16: #{tpu_custom_call.1} parent=11 // pred_fallthru
          _
        // Predicated region
        $region17: #{tpu_custom_call.1} parent=11 // pred_check
          %p366 = pneg %p187
        $region18: #{tpu_custom_call.1} parent=11 // pred_check_branch
          %368 = sbr.rel (%p366) target = $region20
        $region19: #{tpu_custom_call.1} parent=11 // pred_region
          _
        $region20: #{tpu_custom_call.1} parent=11 // pred_fallthru
          _
        // Predicated region
        $region21: #{tpu_custom_call.1} parent=11 // pred_check
          %p369 = pneg %p208
        $region22: #{tpu_custom_call.1} parent=11 // pred_check_branch
          %371 = sbr.rel (%p369) target = $region24
        $region23: #{tpu_custom_call.1} parent=11 // pred_region
          _
        $region24: #{tpu_custom_call.1} parent=11 // pred_fallthru
          _
        // Predicated region
        $region25: #{tpu_custom_call.1} parent=11 // pred_check
          %p372 = pneg %p229
        $region26: #{tpu_custom_call.1} parent=11 // pred_check_branch
          %374 = sbr.rel (%p372) target = $region28
        $region27: #{tpu_custom_call.1} parent=11 // pred_region
          _
        $region28: #{tpu_custom_call.1} parent=11 // pred_fallthru
          _
        // Predicated region
        $region29: #{tpu_custom_call.1} parent=11 // pred_check
          %p375 = pneg %p250
        $region30: #{tpu_custom_call.1} parent=11 // pred_check_branch
          %377 = sbr.rel (%p375) target = $region32
        $region31: #{tpu_custom_call.1} parent=11 // pred_region
          _
        $region32: #{tpu_custom_call.1} parent=11 // pred_fallthru
          _
        // Predicated region
        $region33: #{tpu_custom_call.1} parent=11 // pred_check
          %p378 = pneg %p271
        $region34: #{tpu_custom_call.1} parent=11 // pred_check_branch
          %380 = sbr.rel (%p378) target = $region36
        $region35: #{tpu_custom_call.1} parent=11 // pred_region
          _
        $region36: #{tpu_custom_call.1} parent=11 // pred_fallthru
          _
        // Predicated region
        $region37: #{tpu_custom_call.1} parent=11 // pred_check
          %p381 = pneg %p292
        $region38: #{tpu_custom_call.1} parent=11 // pred_check_branch
          %383 = sbr.rel (%p381) target = $region40
        $region39: #{tpu_custom_call.1} parent=11 // pred_region
          _
        $region40: #{tpu_custom_call.1} parent=11 // pred_fallthru
          _
      $region12: #{tpu_custom_call.1} parent=5 // pred_fallthru
        _
      %p384 = scmp.lt.s32.totalorder %s25, 2
      // Predicated region
      $region41: #{tpu_custom_call.1} parent=5 // pred_check
        %p385 = pneg %p384
      $region42: #{tpu_custom_call.1} parent=5 // pred_check_branch
        %387 = sbr.rel (%p385) target = $region44
      $region43: #{tpu_custom_call.1} parent=5 // pred_region
        // Predicated region
        $region45: #{tpu_custom_call.1} parent=43 // pred_check
          %p388 = pneg %p59
        $region46: #{tpu_custom_call.1} parent=43 // pred_check_branch
          %390 = sbr.rel (%p388) target = $region48
        $region47: #{tpu_custom_call.1} parent=43 // pred_region
          %p391 = scmp.lt.s32.totalorder %s32, 1
          %s392 = scalar_select %p391, %s32, 1
          %p393 = scmp.lt.s32.totalorder %s33, 0
          %s394 = scalar_select %p393, %s33, 0
          %s395 = sadd.s32 %s394, %s392
          %s396 = smul.addr %s395, 8
          %s397 = scalar_lea.vmem %s0, %s396
        $region48: #{tpu_custom_call.1} parent=43 // pred_fallthru
          _
        // Predicated region
        $region49: #{tpu_custom_call.1} parent=43 // pred_check
          %p398 = pneg %p87
        $region50: #{tpu_custom_call.1} parent=43 // pred_check_branch
          %400 = sbr.rel (%p398) target = $region52
        $region51: #{tpu_custom_call.1} parent=43 // pred_region
          %p401 = scmp.lt.s32.totalorder %s32, 1
          %s402 = scalar_select %p401, %s32, 1
          %p403 = scmp.lt.s32.totalorder %s33, 0
          %s404 = scalar_select %p403, %s33, 0
          %s405 = sadd.s32 %s404, %s402
          %s406 = smul.addr %s405, 8
          %s407 = scalar_lea.vmem %s1, %s406
        $region52: #{tpu_custom_call.1} parent=43 // pred_fallthru
          _
        // Predicated region
        $region53: #{tpu_custom_call.1} parent=43 // pred_check
          %p408 = pneg %p113
        $region54: #{tpu_custom_call.1} parent=43 // pred_check_branch
          %410 = sbr.rel (%p408) target = $region56
        $region55: #{tpu_custom_call.1} parent=43 // pred_region
          %p411 = scmp.lt.s32.totalorder %s32, 1
          %s412 = scalar_select %p411, %s32, 1
          %s413 = smul.addr %s412, 4
          %s414 = smul.addr %s413, 4
          %s415 = scalar_lea.vmem %s2, %s414
        $region56: #{tpu_custom_call.1} parent=43 // pred_fallthru
          _
        // Predicated region
        $region57: #{tpu_custom_call.1} parent=43 // pred_check
          %p416 = pneg %p139
        $region58: #{tpu_custom_call.1} parent=43 // pred_check_branch
          %418 = sbr.rel (%p416) target = $region60
        $region59: #{tpu_custom_call.1} parent=43 // pred_region
          %p419 = scmp.lt.s32.totalorder %s32, 1
          %s420 = scalar_select %p419, %s32, 1
          %s421 = smul.addr %s420, 4
          %s422 = smul.addr %s421, 4
          %s423 = scalar_lea.vmem %s3, %s422
        $region60: #{tpu_custom_call.1} parent=43 // pred_fallthru
          _
      $region44: #{tpu_custom_call.1} parent=5 // pred_fallthru
        _
      %p424 = scmp.le.s32.totalorder 1, %s25
      %p425 = scmp.lt.s32.totalorder %s25, 3
      %p426 = pnand %p424, %p425
      %p427 = pneg %p426
      // Predicated region
      $region61: #{tpu_custom_call.1} parent=5 // pred_check
        _
      $region62: #{tpu_custom_call.1} parent=5 // pred_check_branch
        %429 = sbr.rel (%p426) target = $region64
      $region63: #{tpu_custom_call.1} parent=5 // pred_region
        %s430 = ssub.s32 %s25, 1
        %p431 = scmp.lt.s32.totalorder %s34, 1
        %s432 = scalar_select %p431, %s34, 1
        %p433 = scmp.lt.s32.totalorder %s35, 0
        %s434 = scalar_select %p433, %s35, 0
        %s435 = sadd.s32 %s434, %s432
        %s436 = smul.addr %s435, 8
        %s437 = scalar_lea.vmem %s0, %s436
        %p438 = pneg %p65
        %p439 = pneg %p62
        %p440 = scmp.lt.s32.totalorder %s34, 1
        %s441 = scalar_select %p440, %s34, 1
        %p442 = scmp.lt.s32.totalorder %s35, 0
        %s443 = scalar_select %p442, %s35, 0
        %s444 = sadd.s32 %s443, %s441
        %s445 = smul.addr %s444, 8
        %s446 = scalar_lea.vmem %s1, %s445
        %p447 = pneg %p93
        %p448 = pneg %p90
        %p449 = scmp.lt.s32.totalorder %s34, 1
        %s450 = scalar_select %p449, %s34, 1
        %s451 = smul.addr %s450, 4
        %s452 = smul.addr %s451, 4
        %s453 = scalar_lea.vmem %s2, %s452
        %p454 = pneg %p119
        %p455 = pneg %p116
        %p456 = scmp.lt.s32.totalorder %s34, 1
        %s457 = scalar_select %p456, %s34, 1
        %s458 = smul.addr %s457, 4
        %s459 = smul.addr %s458, 4
        %s460 = scalar_lea.vmem %s3, %s459
        %p461 = pneg %p145
        %p462 = pneg %p142
        %p463 = pneg %p166
        %p464 = pneg %p163
        %p465 = pneg %p187
        %p466 = pneg %p184
        %p467 = pneg %p208
        %p468 = pneg %p205
        %p469 = pneg %p229
        %p470 = pneg %p226
        %p471 = pneg %p250
        %p472 = pneg %p247
        %p473 = pneg %p271
        %p474 = pneg %p268
        %p475 = pneg %p292
        %p476 = pneg %p289
        %p477 = pneg %p320
        %p478 = pneg %p317
        %s479 = sand.u32 %s307, 1
        %s480 = scalar_lea.sflag [#allocation4], %s479
        %s481 = sand.u32 %s307, 1
        %s482 = smul.addr %s481, 8
        %s483 = scalar_lea.vmem [#allocation3], %s482
        %p484 = pneg %p348
        %p485 = pneg %p345
        %s486 = sand.u32 %s335, 1
        %s487 = scalar_lea.sflag [#allocation6], %s486
        %s488 = sand.u32 %s335, 1
        %s489 = smul.addr %s488, 32
        %s490 = scalar_lea.vmem [#allocation5], %s489
        %p491 = scmp.lt.s32.totalorder %s34, 1
        %s492 = scalar_select %p491, %s34, 1
        %p493 = scmp.lt.s32.totalorder %s35, 0
        %s494 = scalar_select %p493, %s35, 0
        %s495 = sadd.s32 %s494, %s492
        %s496 = smul.addr %s495, 8
        %s497 = scalar_lea.vmem %s0, %s496
        %p498 = scmp.lt.s32.totalorder %s34, 1
        %s499 = scalar_select %p498, %s34, 1
        %p500 = scmp.lt.s32.totalorder %s35, 0
        %s501 = scalar_select %p500, %s35, 0
        %s502 = sadd.s32 %s501, %s499
        %s503 = smul.addr %s502, 8
        %s504 = scalar_lea.vmem %s1, %s503
        %p505 = scmp.lt.s32.totalorder %s34, 1
        %s506 = scalar_select %p505, %s34, 1
        %s507 = smul.addr %s506, 4
        %s508 = smul.addr %s507, 4
        %s509 = scalar_lea.vmem %s2, %s508
        %p510 = scmp.lt.s32.totalorder %s34, 1
        %s511 = scalar_select %p510, %s34, 1
        %s512 = smul.addr %s511, 4
        %s513 = smul.addr %s512, 4
        %s514 = scalar_lea.vmem %s3, %s513
        %v516 = vld [vmem:[%s497] sm:$0xff]
        %v517 = vpack.c.bf16 %v516, %v516
        %v518 = vld [vmem:[%s504] sm:$0xff]
        %v519 = vpack.c.bf16 %v518, %v518
        %vm520 = vcmask 261120
        %521 = vst.msk [vmem:[#allocation2] sm:$0xff] %vm520, 0.0
        %v522 = vld [vmem:[%s4] sm:$0xf]
        %v523 = vld [vmem:[%s4 + $0x4] sm:$0xf]
        %v524 = vld [vmem:[%s4 + $0x8] sm:$0xf]
        %v525 = vld [vmem:[%s4 + $0xc] sm:$0xf]
        %v526 = vld [vmem:[%s5] sm:$0xf]
        %v527 = vld [vmem:[%s5 + $0x4] sm:$0xf]
        %v528 = vld [vmem:[%s5 + $0x8] sm:$0xf]
        %v529 = vld [vmem:[%s5 + $0xc] sm:$0xf]
        %v530 = vld [vmem:[%s5 + $0x10] sm:$0xf]
        %v531 = vld [vmem:[%s5 + $0x14] sm:$0xf]
        %v532 = vld [vmem:[%s5 + $0x18] sm:$0xf]
        %v533 = vld [vmem:[%s5 + $0x1c] sm:$0xf]
        %v534 = vld [vmem:[%s5 + $0x20] sm:$0xf]
        %v535 = vld [vmem:[%s5 + $0x24] sm:$0xf]
        %v536 = vld [vmem:[%s5 + $0x28] sm:$0xf]
        %v537 = vld [vmem:[%s5 + $0x2c] sm:$0xf]
        %v550 = vunpack.c.l.b16 %v526
        %v551 = vunpack.c.l.b16 %v527
        %v552 = vunpack.c.l.b16 %v528
        %v553 = vunpack.c.l.b16 %v529
        %v554 = vunpack.c.l.b16 %v530
        %v555 = vunpack.c.l.b16 %v531
        %v556 = vunpack.c.l.b16 %v532
        %v557 = vunpack.c.l.b16 %v533
        %v558 = vunpack.c.l.b16 %v534
        %v559 = vunpack.c.l.b16 %v535
        %v560 = vunpack.c.l.b16 %v536
        %v561 = vunpack.c.l.b16 %v537
        %v562 = vpack.c.b16 %v551, %v550
        %v563 = vpack.c.b16 %v553, %v552
        %v564 = vpack.c.b16 %v555, %v554
        %v565 = vpack.c.b16 %v557, %v556
        %v566 = vpack.c.b16 %v559, %v558
        %v567 = vpack.c.b16 %v561, %v560
        %vm574 = vcmask 785408
        %v576 = vsel %vm574, %v519, 0
        %578 = vmatprep.subr.bf16.mxu0 0
        %579 = vmatpush1.bf16.msra.mxu0 %v562
        %580 = vmatprep.subr.bf16.mxu0 0
        %581 = vmatpush1.bf16.msra.mxu0 %v563
        %582 = vmatprep.subr.bf16.mxu0 0
        %583 = vmatpush1.bf16.msra.mxu0 %v564
        %584 = vmatprep.subr.bf16.mxu0 0
        %585 = vmatpush1.bf16.msra.mxu0 %v565
        %586 = vmatprep.subr.bf16.mxu0 0
        %587 = vmatpush1.bf16.msra.mxu0 %v566
        %588 = vmatprep.subr.bf16.mxu0 0
        %589 = vmatpush1.bf16.msra.mxu0 %v567
        %590 = vmatprep.subr.bf16.mxu0 0
        %591 = vmatpush1.bf16.msra.mxu0 0
        %592 = vmatprep.subr.bf16.mxu0 0
        %593 = vmatpush1.bf16.msra.mxu0 0
        %594 = vmatprep.subr.bf16.mxu0 0
        %595 = vmatpush1.bf16.msra.mxu0 0
        %596 = vmatprep.subr.bf16.mxu0 0
        %597 = vmatpush1.bf16.msra.mxu0 0
        %598 = vmatprep.subr.bf16.mxu0 0
        %599 = vmatpush1.bf16.msra.mxu0 0
        %600 = vmatprep.subr.bf16.mxu0 0
        %601 = vmatpush1.bf16.msra.mxu0 0
        %602 = vmatprep.subr.bf16.mxu0 0
        %603 = vmatpush1.bf16.msra.mxu0 0
        %604 = vmatprep.subr.bf16.mxu0 0
        %605 = vmatpush1.bf16.msra.mxu0 0
        %606 = vmatprep.subr.bf16.mxu0 0
        %607 = vmatpush1.bf16.msra.mxu0 0
        %608 = vmatprep.subr.bf16.mxu0 0
        %609 = vmatpush1.bf16.msra.mxu0 0
        %610 = vmatprep.mubr.bf16.mxu0 0
        %611 = vmatmul.mubr.bf16.gmra.mrb[0].mxu0 %v576
        %v612 = vpop.f32.mrb[0].mxu0
        %v613 = vadd.f32 0.0, %v612
        %v614 = vpop.f32.mrb[0].mxu0
        %v615 = vpop.f32.mrb[0].mxu0
        %v616 = vpop.f32.mrb[0].mxu0
        %617 = vdwg.mxu0
        %v622 = vunpack.c.l.b16 %v522
        %v623 = vunpack.c.l.b16 %v523
        %v624 = vunpack.c.l.b16 %v524
        %v625 = vunpack.c.l.b16 %v525
        %v626 = vpack.c.b16 %v623, %v622
        %v627 = vpack.c.b16 %v625, %v624
        %v631 = vsel %vm520, %v517, 0
        %633 = vmatprep.subr.bf16.mxu0 0
        %634 = vmatpush1.bf16.msra.mxu0 %v626
        %635 = vmatprep.subr.bf16.mxu0 0
        %636 = vmatpush1.bf16.msra.mxu0 %v627
        %637 = vmatprep.subr.bf16.mxu0 0
        %638 = vmatpush1.bf16.msra.mxu0 0
        %639 = vmatprep.subr.bf16.mxu0 0
        %640 = vmatpush1.bf16.msra.mxu0 0
        %641 = vmatprep.subr.bf16.mxu0 0
        %642 = vmatpush1.bf16.msra.mxu0 0
        %643 = vmatprep.subr.bf16.mxu0 0
        %644 = vmatpush1.bf16.msra.mxu0 0
        %645 = vmatprep.subr.bf16.mxu0 0
        %646 = vmatpush1.bf16.msra.mxu0 0
        %647 = vmatprep.subr.bf16.mxu0 0
        %648 = vmatpush1.bf16.msra.mxu0 0
        %649 = vmatprep.subr.bf16.mxu0 0
        %650 = vmatpush1.bf16.msra.mxu0 0
        %651 = vmatprep.subr.bf16.mxu0 0
        %652 = vmatpush1.bf16.msra.mxu0 0
        %653 = vmatprep.subr.bf16.mxu0 0
        %654 = vmatpush1.bf16.msra.mxu0 0
        %655 = vmatprep.subr.bf16.mxu0 0
        %656 = vmatpush1.bf16.msra.mxu0 0
        %657 = vmatprep.subr.bf16.mxu0 0
        %658 = vmatpush1.bf16.msra.mxu0 0
        %659 = vmatprep.subr.bf16.mxu0 0
        %660 = vmatpush1.bf16.msra.mxu0 0
        %661 = vmatprep.subr.bf16.mxu0 0
        %662 = vmatpush1.bf16.msra.mxu0 0
        %663 = vmatprep.subr.bf16.mxu0 0
        %664 = vmatpush1.bf16.msra.mxu0 0
        %665 = vmatprep.mubr.bf16.mxu0 0
        %666 = vmatmul.mubr.bf16.gmra.mrb[0].mxu0 %v631
        %v667 = vpop.f32.mrb[0].mxu0
        %v668 = vadd.f32 %v613, %v667
        %v669 = vpop.f32.mrb[0].mxu0
        %v670 = vpop.f32.mrb[0].mxu0
        %v671 = vpop.f32.mrb[0].mxu0
        %672 = vdwg.mxu0
        %v673 = vld [vmem:[%s6] sm:$0x1]
        %v675 = vlaneseq
        %v676 = vshrl.u32 %v675, 7
        %v677 = vsub.s32 0, %v676
        %v678 = vrot.slane %v673, %v677
        %v680 = vadd.f32 %v668, %v678
        %v681 = vpack.c.bf16 %v680, %v680
        %v682 = vld [vmem:[%s509] sm:$0xf]
        %vm683 = vcmask 64512
        %v685 = vsel %vm683, %v681, 0
        %vm687 = vcmask 1043456
        %v689 = vsel %vm687, %v682, 0
        %691 = vmatprep.subr.bf16.mxu0 0
        %692 = vmatpush1.bf16.msra.mxu0 %v689
        %693 = vmatprep.subr.bf16.mxu0 0
        %694 = vmatpush1.bf16.msra.mxu0 0
        %695 = vmatprep.subr.bf16.mxu0 0
        %696 = vmatpush1.bf16.msra.mxu0 0
        %697 = vmatprep.subr.bf16.mxu0 0
        %698 = vmatpush1.bf16.msra.mxu0 0
        %699 = vmatprep.subr.bf16.mxu0 0
        %700 = vmatpush1.bf16.msra.mxu0 0
        %701 = vmatprep.subr.bf16.mxu0 0
        %702 = vmatpush1.bf16.msra.mxu0 0
        %703 = vmatprep.subr.bf16.mxu0 0
        %704 = vmatpush1.bf16.msra.mxu0 0
        %705 = vmatprep.subr.bf16.mxu0 0
        %706 = vmatpush1.bf16.msra.mxu0 0
        %707 = vmatprep.subr.bf16.mxu0 0
        %708 = vmatpush1.bf16.msra.mxu0 0
        %709 = vmatprep.subr.bf16.mxu0 0
        %710 = vmatpush1.bf16.msra.mxu0 0
        %711 = vmatprep.subr.bf16.mxu0 0
        %712 = vmatpush1.bf16.msra.mxu0 0
        %713 = vmatprep.subr.bf16.mxu0 0
        %714 = vmatpush1.bf16.msra.mxu0 0
        %715 = vmatprep.subr.bf16.mxu0 0
        %716 = vmatpush1.bf16.msra.mxu0 0
        %717 = vmatprep.subr.bf16.mxu0 0
        %718 = vmatpush1.bf16.msra.mxu0 0
        %719 = vmatprep.subr.bf16.mxu0 0
        %720 = vmatpush1.bf16.msra.mxu0 0
        %721 = vmatprep.subr.bf16.mxu0 0
        %722 = vmatpush1.bf16.msra.mxu0 0
        %723 = vmatprep.mubr.bf16.mxu0 0
        %724 = vmatmul.mubr.bf16.gmra.mrb[0].mxu0 %v685
        %v725 = vpop.f32.mrb[0].mxu0
        %v726 = vadd.f32 0.0, %v725
        %v727 = vpop.f32.mrb[0].mxu0
        %v728 = vpop.f32.mrb[0].mxu0
        %v729 = vpop.f32.mrb[0].mxu0
        %730 = vdwg.mxu0
        %v731 = vsel %vm683, %v726, -inf
        %732 = vmax.xlane.f32.xlu0 %v731
        %v733 = vpop.xlane.xlu0 %732
        %v734 = vsub.f32 %v726, %v733
        %v735 = vmul.f32 %v734, 1.442695
        %v736 = vpow.pop %v735
        %v737 = vsel %vm683, %v736, 0.0
        %738 = vadd.xlane.f32.xlu0 %v737
        %v739 = vpop.xlane.xlu0 %738
        %v740 = vrcp.pop %v739
        %v741 = vmul.f32 %v736, %v740
        %742 = vst.msk [vmem:[%s490] sm:$0xff] %vm683, %v741
        %v743 = vpack.c.bf16 %v741, %v741
        %v744 = vld [vmem:[%s514] sm:$0xf]
        %v746 = vsel %vm683, %v743, 0
        %v749 = vsel %vm687, %v744, 0
        %751 = vmatprep.subr.bf16.mxu0 0
        %752 = vmatpush1.bf16.msra.mxu0 %v749
        %753 = vmatprep.subr.bf16.mxu0 0
        %754 = vmatpush1.bf16.msra.mxu0 0
        %755 = vmatprep.subr.bf16.mxu0 0
        %756 = vmatpush1.bf16.msra.mxu0 0
        %757 = vmatprep.subr.bf16.mxu0 0
        %758 = vmatpush1.bf16.msra.mxu0 0
        %759 = vmatprep.subr.bf16.mxu0 0
        %760 = vmatpush1.bf16.msra.mxu0 0
        %761 = vmatprep.subr.bf16.mxu0 0
        %762 = vmatpush1.bf16.msra.mxu0 0
        %763 = vmatprep.subr.bf16.mxu0 0
        %764 = vmatpush1.bf16.msra.mxu0 0
        %765 = vmatprep.subr.bf16.mxu0 0
        %766 = vmatpush1.bf16.msra.mxu0 0
        %767 = vmatprep.subr.bf16.mxu0 0
        %768 = vmatpush1.bf16.msra.mxu0 0
        %769 = vmatprep.subr.bf16.mxu0 0
        %770 = vmatpush1.bf16.msra.mxu0 0
        %771 = vmatprep.subr.bf16.mxu0 0
        %772 = vmatpush1.bf16.msra.mxu0 0
        %773 = vmatprep.subr.bf16.mxu0 0
        %774 = vmatpush1.bf16.msra.mxu0 0
        %775 = vmatprep.subr.bf16.mxu0 0
        %776 = vmatpush1.bf16.msra.mxu0 0
        %777 = vmatprep.subr.bf16.mxu0 0
        %778 = vmatpush1.bf16.msra.mxu0 0
        %779 = vmatprep.subr.bf16.mxu0 0
        %780 = vmatpush1.bf16.msra.mxu0 0
        %781 = vmatprep.subr.bf16.mxu0 0
        %782 = vmatpush1.bf16.msra.mxu0 0
        %783 = vmatprep.mubr.bf16.mxu0 0
        %784 = vmatmul.mubr.bf16.gmra.mrb[0].mxu0 %v746
        %v785 = vpop.f32.mrb[0].mxu0
        %v786 = vadd.f32 0.0, %v785
        %v787 = vpop.f32.mrb[0].mxu0
        %v788 = vpop.f32.mrb[0].mxu0
        %v789 = vpop.f32.mrb[0].mxu0
        %790 = vdwg.mxu0
        %v791 = vld [vmem:[#allocation2] sm:$0xff]
        %v792 = vpack.c.bf16 %v786, %v786
        %v793 = vld [vmem:[%s7] sm:$0xf]
        %v795 = vsel %vm683, %v792, 0
        %v798 = vsel %vm687, %v793, 0
        %800 = vmatprep.subr.bf16.mxu0 0
        %801 = vmatpush1.bf16.msra.mxu0 %v798
        %802 = vmatprep.subr.bf16.mxu0 0
        %803 = vmatpush1.bf16.msra.mxu0 0
        %804 = vmatprep.subr.bf16.mxu0 0
        %805 = vmatpush1.bf16.msra.mxu0 0
        %806 = vmatprep.subr.bf16.mxu0 0
        %807 = vmatpush1.bf16.msra.mxu0 0
        %808 = vmatprep.subr.bf16.mxu0 0
        %809 = vmatpush1.bf16.msra.mxu0 0
        %810 = vmatprep.subr.bf16.mxu0 0
        %811 = vmatpush1.bf16.msra.mxu0 0
        %812 = vmatprep.subr.bf16.mxu0 0
        %813 = vmatpush1.bf16.msra.mxu0 0
        %814 = vmatprep.subr.bf16.mxu0 0
        %815 = vmatpush1.bf16.msra.mxu0 0
        %816 = vmatprep.subr.bf16.mxu0 0
        %817 = vmatpush1.bf16.msra.mxu0 0
        %818 = vmatprep.subr.bf16.mxu0 0
        %819 = vmatpush1.bf16.msra.mxu0 0
        %820 = vmatprep.subr.bf16.mxu0 0
        %821 = vmatpush1.bf16.msra.mxu0 0
        %822 = vmatprep.subr.bf16.mxu0 0
        %823 = vmatpush1.bf16.msra.mxu0 0
        %824 = vmatprep.subr.bf16.mxu0 0
        %825 = vmatpush1.bf16.msra.mxu0 0
        %826 = vmatprep.subr.bf16.mxu0 0
        %827 = vmatpush1.bf16.msra.mxu0 0
        %828 = vmatprep.subr.bf16.mxu0 0
        %829 = vmatpush1.bf16.msra.mxu0 0
        %830 = vmatprep.subr.bf16.mxu0 0
        %831 = vmatpush1.bf16.msra.mxu0 0
        %832 = vmatprep.mubr.bf16.mxu0 0
        %833 = vmatmul.mubr.bf16.gmra.mrb[0].mxu0 %v795
        %v834 = vpop.f32.mrb[0].mxu0
        %v835 = vadd.f32 0.0, %v834
        %v836 = vpop.f32.mrb[0].mxu0
        %v837 = vpop.f32.mrb[0].mxu0
        %v838 = vpop.f32.mrb[0].mxu0
        %839 = vdwg.mxu0
        %v840 = vadd.f32 %v791, %v835
        %841 = vst.msk [vmem:[#allocation2] sm:$0xff] %vm520, %v840
        %s842 = scalar_lea.vmem %s4, 16
        %v843 = vld [vmem:[%s842] sm:$0xf]
        %v844 = vld [vmem:[%s842 + $0x4] sm:$0xf]
        %v845 = vld [vmem:[%s842 + $0x8] sm:$0xf]
        %v846 = vld [vmem:[%s842 + $0xc] sm:$0xf]
        %s847 = scalar_lea.vmem %s5, 48
        %v848 = vld [vmem:[%s847] sm:$0xf]
        %v849 = vld [vmem:[%s847 + $0x4] sm:$0xf]
        %v850 = vld [vmem:[%s847 + $0x8] sm:$0xf]
        %v851 = vld [vmem:[%s847 + $0xc] sm:$0xf]
        %v852 = vld [vmem:[%s847 + $0x10] sm:$0xf]
        %v853 = vld [vmem:[%s847 + $0x14] sm:$0xf]
        %v854 = vld [vmem:[%s847 + $0x18] sm:$0xf]
        %v855 = vld [vmem:[%s847 + $0x1c] sm:$0xf]
        %v856 = vld [vmem:[%s847 + $0x20] sm:$0xf]
        %v857 = vld [vmem:[%s847 + $0x24] sm:$0xf]
        %v858 = vld [vmem:[%s847 + $0x28] sm:$0xf]
        %v859 = vld [vmem:[%s847 + $0x2c] sm:$0xf]
        %v872 = vunpack.c.l.b16 %v848
        %v873 = vunpack.c.l.b16 %v849
        %v874 = vunpack.c.l.b16 %v850
        %v875 = vunpack.c.l.b16 %v851
        %v876 = vunpack.c.l.b16 %v852
        %v877 = vunpack.c.l.b16 %v853
        %v878 = vunpack.c.l.b16 %v854
        %v879 = vunpack.c.l.b16 %v855
        %v880 = vunpack.c.l.b16 %v856
        %v881 = vunpack.c.l.b16 %v857
        %v882 = vunpack.c.l.b16 %v858
        %v883 = vunpack.c.l.b16 %v859
        %v884 = vpack.c.b16 %v873, %v872
        %v885 = vpack.c.b16 %v875, %v874
        %v886 = vpack.c.b16 %v877, %v876
        %v887 = vpack.c.b16 %v879, %v878
        %v888 = vpack.c.b16 %v881, %v880
        %v889 = vpack.c.b16 %v883, %v882
        %896 = vmatprep.subr.bf16.mxu0 0
        %897 = vmatpush1.bf16.msra.mxu0 %v884
        %898 = vmatprep.subr.bf16.mxu0 0
        %899 = vmatpush1.bf16.msra.mxu0 %v885
        %900 = vmatprep.subr.bf16.mxu0 0
        %901 = vmatpush1.bf16.msra.mxu0 %v886
        %902 = vmatprep.subr.bf16.mxu0 0
        %903 = vmatpush1.bf16.msra.mxu0 %v887
        %904 = vmatprep.subr.bf16.mxu0 0
        %905 = vmatpush1.bf16.msra.mxu0 %v888
        %906 = vmatprep.subr.bf16.mxu0 0
        %907 = vmatpush1.bf16.msra.mxu0 %v889
        %908 = vmatprep.subr.bf16.mxu0 0
        %909 = vmatpush1.bf16.msra.mxu0 0
        %910 = vmatprep.subr.bf16.mxu0 0
        %911 = vmatpush1.bf16.msra.mxu0 0
        %912 = vmatprep.subr.bf16.mxu0 0
        %913 = vmatpush1.bf16.msra.mxu0 0
        %914 = vmatprep.subr.bf16.mxu0 0
        %915 = vmatpush1.bf16.msra.mxu0 0
        %916 = vmatprep.subr.bf16.mxu0 0
        %917 = vmatpush1.bf16.msra.mxu0 0
        %918 = vmatprep.subr.bf16.mxu0 0
        %919 = vmatpush1.bf16.msra.mxu0 0
        %920 = vmatprep.subr.bf16.mxu0 0
        %921 = vmatpush1.bf16.msra.mxu0 0
        %922 = vmatprep.subr.bf16.mxu0 0
        %923 = vmatpush1.bf16.msra.mxu0 0
        %924 = vmatprep.subr.bf16.mxu0 0
        %925 = vmatpush1.bf16.msra.mxu0 0
        %926 = vmatprep.subr.bf16.mxu0 0
        %927 = vmatpush1.bf16.msra.mxu0 0
        %928 = vmatprep.mubr.bf16.mxu0 0
        %929 = vmatmul.mubr.bf16.gmra.mrb[0].mxu0 %v576
        %v930 = vpop.f32.mrb[0].mxu0
        %v931 = vadd.f32 0.0, %v930
        %v932 = vpop.f32.mrb[0].mxu0
        %v933 = vpop.f32.mrb[0].mxu0
        %v934 = vpop.f32.mrb[0].mxu0
        %935 = vdwg.mxu0
        %v940 = vunpack.c.l.b16 %v843
        %v941 = vunpack.c.l.b16 %v844
        %v942 = vunpack.c.l.b16 %v845
        %v943 = vunpack.c.l.b16 %v846
        %v944 = vpack.c.b16 %v941, %v940
        %v945 = vpack.c.b16 %v943, %v942
        %948 = vmatprep.subr.bf16.mxu0 0
        %949 = vmatpush1.bf16.msra.mxu0 %v944
        %950 = vmatprep.subr.bf16.mxu0 0
        %951 = vmatpush1.bf16.msra.mxu0 %v945
        %952 = vmatprep.subr.bf16.mxu0 0
        %953 = vmatpush1.bf16.msra.mxu0 0
        %954 = vmatprep.subr.bf16.mxu0 0
        %955 = vmatpush1.bf16.msra.mxu0 0
        %956 = vmatprep.subr.bf16.mxu0 0
        %957 = vmatpush1.bf16.msra.mxu0 0
        %958 = vmatprep.subr.bf16.mxu0 0
        %959 = vmatpush1.bf16.msra.mxu0 0
        %960 = vmatprep.subr.bf16.mxu0 0
        %961 = vmatpush1.bf16.msra.mxu0 0
        %962 = vmatprep.subr.bf16.mxu0 0
        %963 = vmatpush1.bf16.msra.mxu0 0
        %964 = vmatprep.subr.bf16.mxu0 0
        %965 = vmatpush1.bf16.msra.mxu0 0
        %966 = vmatprep.subr.bf16.mxu0 0
        %967 = vmatpush1.bf16.msra.mxu0 0
        %968 = vmatprep.subr.bf16.mxu0 0
        %969 = vmatpush1.bf16.msra.mxu0 0
        %970 = vmatprep.subr.bf16.mxu0 0
        %971 = vmatpush1.bf16.msra.mxu0 0
        %972 = vmatprep.subr.bf16.mxu0 0
        %973 = vmatpush1.bf16.msra.mxu0 0
        %974 = vmatprep.subr.bf16.mxu0 0
        %975 = vmatpush1.bf16.msra.mxu0 0
        %976 = vmatprep.subr.bf16.mxu0 0
        %977 = vmatpush1.bf16.msra.mxu0 0
        %978 = vmatprep.subr.bf16.mxu0 0
        %979 = vmatpush1.bf16.msra.mxu0 0
        %980 = vmatprep.mubr.bf16.mxu0 0
        %981 = vmatmul.mubr.bf16.gmra.mrb[0].mxu0 %v631
        %v982 = vpop.f32.mrb[0].mxu0
        %v983 = vadd.f32 %v931, %v982
        %v984 = vpop.f32.mrb[0].mxu0
        %v985 = vpop.f32.mrb[0].mxu0
        %v986 = vpop.f32.mrb[0].mxu0
        %987 = vdwg.mxu0
        %s988 = scalar_lea.vmem %s6, 1
        %v989 = vld [vmem:[%s988] sm:$0x1]
        %v991 = vlaneseq
        %v992 = vshrl.u32 %v991, 7
        %v993 = vsub.s32 0, %v992
        %v994 = vrot.slane %v989, %v993
        %v996 = vadd.f32 %v983, %v994
        %v997 = vpack.c.bf16 %v996, %v996
        %s998 = scalar_lea.vmem %s509, 4
        %v999 = vld [vmem:[%s998] sm:$0xf]
        %v1001 = vsel %vm683, %v997, 0
        %v1004 = vsel %vm687, %v999, 0
        %1006 = vmatprep.subr.bf16.mxu0 0
        %1007 = vmatpush1.bf16.msra.mxu0 %v1004
        %1008 = vmatprep.subr.bf16.mxu0 0
        %1009 = vmatpush1.bf16.msra.mxu0 0
        %1010 = vmatprep.subr.bf16.mxu0 0
        %1011 = vmatpush1.bf16.msra.mxu0 0
        %1012 = vmatprep.subr.bf16.mxu0 0
        %1013 = vmatpush1.bf16.msra.mxu0 0
        %1014 = vmatprep.subr.bf16.mxu0 0
        %1015 = vmatpush1.bf16.msra.mxu0 0
        %1016 = vmatprep.subr.bf16.mxu0 0
        %1017 = vmatpush1.bf16.msra.mxu0 0
        %1018 = vmatprep.subr.bf16.mxu0 0
        %1019 = vmatpush1.bf16.msra.mxu0 0
        %1020 = vmatprep.subr.bf16.mxu0 0
        %1021 = vmatpush1.bf16.msra.mxu0 0
        %1022 = vmatprep.subr.bf16.mxu0 0
        %1023 = vmatpush1.bf16.msra.mxu0 0
        %1024 = vmatprep.subr.bf16.mxu0 0
        %1025 = vmatpush1.bf16.msra.mxu0 0
        %1026 = vmatprep.subr.bf16.mxu0 0
        %1027 = vmatpush1.bf16.msra.mxu0 0
        %1028 = vmatprep.subr.bf16.mxu0 0
        %1029 = vmatpush1.bf16.msra.mxu0 0
        %1030 = vmatprep.subr.bf16.mxu0 0
        %1031 = vmatpush1.bf16.msra.mxu0 0
        %1032 = vmatprep.subr.bf16.mxu0 0
        %1033 = vmatpush1.bf16.msra.mxu0 0
        %1034 = vmatprep.subr.bf16.mxu0 0
        %1035 = vmatpush1.bf16.msra.mxu0 0
        %1036 = vmatprep.subr.bf16.mxu0 0
        %1037 = vmatpush1.bf16.msra.mxu0 0
        %1038 = vmatprep.mubr.bf16.mxu0 0
        %1039 = vmatmul.mubr.bf16.gmra.mrb[0].mxu0 %v1001
        %v1040 = vpop.f32.mrb[0].mxu0
        %v1041 = vadd.f32 0.0, %v1040
        %v1042 = vpop.f32.mrb[0].mxu0
        %v1043 = vpop.f32.mrb[0].mxu0
        %v1044 = vpop.f32.mrb[0].mxu0
        %1045 = vdwg.mxu0
        %v1046 = vsel %vm683, %v1041, -inf
        %1047 = vmax.xlane.f32.xlu0 %v1046
        %v1048 = vpop.xlane.xlu0 %1047
        %v1049 = vsub.f32 %v1041, %v1048
        %v1050 = vmul.f32 %v1049, 1.442695
        %v1051 = vpow.pop %v1050
        %v1052 = vsel %vm683, %v1051, 0.0
        %1053 = vadd.xlane.f32.xlu0 %v1052
        %v1054 = vpop.xlane.xlu0 %1053
        %v1055 = vrcp.pop %v1054
        %v1056 = vmul.f32 %v1051, %v1055
        %s1057 = scalar_lea.vmem %s490, 8 [#allocation5]
        %1058 = vst.msk [vmem:[%s1057] sm:$0xff] %vm683, %v1056
        %v1059 = vpack.c.bf16 %v1056, %v1056
        %s1060 = scalar_lea.vmem %s514, 4
        %v1061 = vld [vmem:[%s1060] sm:$0xf]
        %v1063 = vsel %vm683, %v1059, 0
        %v1066 = vsel %vm687, %v1061, 0
        %1068 = vmatprep.subr.bf16.mxu0 0
        %1069 = vmatpush1.bf16.msra.mxu0 %v1066
        %1070 = vmatprep.subr.bf16.mxu0 0
        %1071 = vmatpush1.bf16.msra.mxu0 0
        %1072 = vmatprep.subr.bf16.mxu0 0
        %1073 = vmatpush1.bf16.msra.mxu0 0
        %1074 = vmatprep.subr.bf16.mxu0 0
        %1075 = vmatpush1.bf16.msra.mxu0 0
        %1076 = vmatprep.subr.bf16.mxu0 0
        %1077 = vmatpush1.bf16.msra.mxu0 0
        %1078 = vmatprep.subr.bf16.mxu0 0
        %1079 = vmatpush1.bf16.msra.mxu0 0
        %1080 = vmatprep.subr.bf16.mxu0 0
        %1081 = vmatpush1.bf16.msra.mxu0 0
        %1082 = vmatprep.subr.bf16.mxu0 0
        %1083 = vmatpush1.bf16.msra.mxu0 0
        %1084 = vmatprep.subr.bf16.mxu0 0
        %1085 = vmatpush1.bf16.msra.mxu0 0
        %1086 = vmatprep.subr.bf16.mxu0 0
        %1087 = vmatpush1.bf16.msra.mxu0 0
        %1088 = vmatprep.subr.bf16.mxu0 0
        %1089 = vmatpush1.bf16.msra.mxu0 0
        %1090 = vmatprep.subr.bf16.mxu0 0
        %1091 = vmatpush1.bf16.msra.mxu0 0
        %1092 = vmatprep.subr.bf16.mxu0 0
        %1093 = vmatpush1.bf16.msra.mxu0 0
        %1094 = vmatprep.subr.bf16.mxu0 0
        %1095 = vmatpush1.bf16.msra.mxu0 0
        %1096 = vmatprep.subr.bf16.mxu0 0
        %1097 = vmatpush1.bf16.msra.mxu0 0
        %1098 = vmatprep.subr.bf16.mxu0 0
        %1099 = vmatpush1.bf16.msra.mxu0 0
        %1100 = vmatprep.mubr.bf16.mxu0 0
        %1101 = vmatmul.mubr.bf16.gmra.mrb[0].mxu0 %v1063
        %v1102 = vpop.f32.mrb[0].mxu0
        %v1103 = vadd.f32 0.0, %v1102
        %v1104 = vpop.f32.mrb[0].mxu0
        %v1105 = vpop.f32.mrb[0].mxu0
        %v1106 = vpop.f32.mrb[0].mxu0
        %1107 = vdwg.mxu0
        %v1108 = vld [vmem:[#allocation2] sm:$0xff]
        %v1109 = vpack.c.bf16 %v1103, %v1103
        %s1110 = scalar_lea.vmem %s7, 4
        %v1111 = vld [vmem:[%s1110] sm:$0xf]
        %v1113 = vsel %vm683, %v1109, 0
        %v1116 = vsel %vm687, %v1111, 0
        %1118 = vmatprep.subr.bf16.mxu0 0
        %1119 = vmatpush1.bf16.msra.mxu0 %v1116
        %1120 = vmatprep.subr.bf16.mxu0 0
        %1121 = vmatpush1.bf16.msra.mxu0 0
        %1122 = vmatprep.subr.bf16.mxu0 0
        %1123 = vmatpush1.bf16.msra.mxu0 0
        %1124 = vmatprep.subr.bf16.mxu0 0
        %1125 = vmatpush1.bf16.msra.mxu0 0
        %1126 = vmatprep.subr.bf16.mxu0 0
        %1127 = vmatpush1.bf16.msra.mxu0 0
        %1128 = vmatprep.subr.bf16.mxu0 0
        %1129 = vmatpush1.bf16.msra.mxu0 0
        %1130 = vmatprep.subr.bf16.mxu0 0
        %1131 = vmatpush1.bf16.msra.mxu0 0
        %1132 = vmatprep.subr.bf16.mxu0 0
        %1133 = vmatpush1.bf16.msra.mxu0 0
        %1134 = vmatprep.subr.bf16.mxu0 0
        %1135 = vmatpush1.bf16.msra.mxu0 0
        %1136 = vmatprep.subr.bf16.mxu0 0
        %1137 = vmatpush1.bf16.msra.mxu0 0
        %1138 = vmatprep.subr.bf16.mxu0 0
        %1139 = vmatpush1.bf16.msra.mxu0 0
        %1140 = vmatprep.subr.bf16.mxu0 0
        %1141 = vmatpush1.bf16.msra.mxu0 0
        %1142 = vmatprep.subr.bf16.mxu0 0
        %1143 = vmatpush1.bf16.msra.mxu0 0
        %1144 = vmatprep.subr.bf16.mxu0 0
        %1145 = vmatpush1.bf16.msra.mxu0 0
        %1146 = vmatprep.subr.bf16.mxu0 0
        %1147 = vmatpush1.bf16.msra.mxu0 0
        %1148 = vmatprep.subr.bf16.mxu0 0
        %1149 = vmatpush1.bf16.msra.mxu0 0
        %1150 = vmatprep.mubr.bf16.mxu0 0
        %1151 = vmatmul.mubr.bf16.gmra.mrb[0].mxu0 %v1113
        %v1152 = vpop.f32.mrb[0].mxu0
        %v1153 = vadd.f32 0.0, %v1152
        %v1154 = vpop.f32.mrb[0].mxu0
        %v1155 = vpop.f32.mrb[0].mxu0
        %v1156 = vpop.f32.mrb[0].mxu0
        %1157 = vdwg.mxu0
        %v1158 = vadd.f32 %v1108, %v1153
        %1159 = vst.msk [vmem:[#allocation2] sm:$0xff] %vm520, %v1158
        %s1160 = scalar_lea.vmem %s4, 32
        %v1161 = vld [vmem:[%s1160] sm:$0xf]
        %v1162 = vld [vmem:[%s1160 + $0x4] sm:$0xf]
        %v1163 = vld [vmem:[%s1160 + $0x8] sm:$0xf]
        %v1164 = vld [vmem:[%s1160 + $0xc] sm:$0xf]
        %s1165 = scalar_lea.vmem %s5, 96
        %v1166 = vld [vmem:[%s1165] sm:$0xf]
        %v1167 = vld [vmem:[%s1165 + $0x4] sm:$0xf]
        %v1168 = vld [vmem:[%s1165 + $0x8] sm:$0xf]
        %v1169 = vld [vmem:[%s1165 + $0xc] sm:$0xf]
        %v1170 = vld [vmem:[%s1165 + $0x10] sm:$0xf]
        %v1171 = vld [vmem:[%s1165 + $0x14] sm:$0xf]
        %v1172 = vld [vmem:[%s1165 + $0x18] sm:$0xf]
        %v1173 = vld [vmem:[%s1165 + $0x1c] sm:$0xf]
        %v1174 = vld [vmem:[%s1165 + $0x20] sm:$0xf]
        %v1175 = vld [vmem:[%s1165 + $0x24] sm:$0xf]
        %v1176 = vld [vmem:[%s1165 + $0x28] sm:$0xf]
        %v1177 = vld [vmem:[%s1165 + $0x2c] sm:$0xf]
        %v1190 = vunpack.c.l.b16 %v1166
        %v1191 = vunpack.c.l.b16 %v1167
        %v1192 = vunpack.c.l.b16 %v1168
        %v1193 = vunpack.c.l.b16 %v1169
        %v1194 = vunpack.c.l.b16 %v1170
        %v1195 = vunpack.c.l.b16 %v1171
        %v1196 = vunpack.c.l.b16 %v1172
        %v1197 = vunpack.c.l.b16 %v1173
        %v1198 = vunpack.c.l.b16 %v1174
        %v1199 = vunpack.c.l.b16 %v1175
        %v1200 = vunpack.c.l.b16 %v1176
        %v1201 = vunpack.c.l.b16 %v1177
        %v1202 = vpack.c.b16 %v1191, %v1190
        %v1203 = vpack.c.b16 %v1193, %v1192
        %v1204 = vpack.c.b16 %v1195, %v1194
        %v1205 = vpack.c.b16 %v1197, %v1196
        %v1206 = vpack.c.b16 %v1199, %v1198
        %v1207 = vpack.c.b16 %v1201, %v1200
        %1214 = vmatprep.subr.bf16.mxu0 0
        %1215 = vmatpush1.bf16.msra.mxu0 %v1202
        %1216 = vmatprep.subr.bf16.mxu0 0
        %1217 = vmatpush1.bf16.msra.mxu0 %v1203
        %1218 = vmatprep.subr.bf16.mxu0 0
        %1219 = vmatpush1.bf16.msra.mxu0 %v1204
        %1220 = vmatprep.subr.bf16.mxu0 0
        %1221 = vmatpush1.bf16.msra.mxu0 %v1205
        %1222 = vmatprep.subr.bf16.mxu0 0
        %1223 = vmatpush1.bf16.msra.mxu0 %v1206
        %1224 = vmatprep.subr.bf16.mxu0 0
        %1225 = vmatpush1.bf16.msra.mxu0 %v1207
        %1226 = vmatprep.subr.bf16.mxu0 0
        %1227 = vmatpush1.bf16.msra.mxu0 0
        %1228 = vmatprep.subr.bf16.mxu0 0
        %1229 = vmatpush1.bf16.msra.mxu0 0
        %1230 = vmatprep.subr.bf16.mxu0 0
        %1231 = vmatpush1.bf16.msra.mxu0 0
        %1232 = vmatprep.subr.bf16.mxu0 0
        %1233 = vmatpush1.bf16.msra.mxu0 0
        %1234 = vmatprep.subr.bf16.mxu0 0
        %1235 = vmatpush1.bf16.msra.mxu0 0
        %1236 = vmatprep.subr.bf16.mxu0 0
        %1237 = vmatpush1.bf16.msra.mxu0 0
        %1238 = vmatprep.subr.bf16.mxu0 0
        %1239 = vmatpush1.bf16.msra.mxu0 0
        %1240 = vmatprep.subr.bf16.mxu0 0
        %1241 = vmatpush1.bf16.msra.mxu0 0
        %1242 = vmatprep.subr.bf16.mxu0 0
        %1243 = vmatpush1.bf16.msra.mxu0 0
        %1244 = vmatprep.subr.bf16.mxu0 0
        %1245 = vmatpush1.bf16.msra.mxu0 0
        %1246 = vmatprep.mubr.bf16.mxu0 0
        %1247 = vmatmul.mubr.bf16.gmra.mrb[0].mxu0 %v576
        %v1248 = vpop.f32.mrb[0].mxu0
        %v1249 = vadd.f32 0.0, %v1248
        %v1250 = vpop.f32.mrb[0].mxu0
        %v1251 = vpop.f32.mrb[0].mxu0
        %v1252 = vpop.f32.mrb[0].mxu0
        %1253 = vdwg.mxu0
        %v1258 = vunpack.c.l.b16 %v1161
        %v1259 = vunpack.c.l.b16 %v1162
        %v1260 = vunpack.c.l.b16 %v1163
        %v1261 = vunpack.c.l.b16 %v1164
        %v1262 = vpack.c.b16 %v1259, %v1258
        %v1263 = vpack.c.b16 %v1261, %v1260
        %1266 = vmatprep.subr.bf16.mxu0 0
        %1267 = vmatpush1.bf16.msra.mxu0 %v1262
        %1268 = vmatprep.subr.bf16.mxu0 0
        %1269 = vmatpush1.bf16.msra.mxu0 %v1263
        %1270 = vmatprep.subr.bf16.mxu0 0
        %1271 = vmatpush1.bf16.msra.mxu0 0
        %1272 = vmatprep.subr.bf16.mxu0 0
        %1273 = vmatpush1.bf16.msra.mxu0 0
        %1274 = vmatprep.subr.bf16.mxu0 0
        %1275 = vmatpush1.bf16.msra.mxu0 0
        %1276 = vmatprep.subr.bf16.mxu0 0
        %1277 = vmatpush1.bf16.msra.mxu0 0
        %1278 = vmatprep.subr.bf16.mxu0 0
        %1279 = vmatpush1.bf16.msra.mxu0 0
        %1280 = vmatprep.subr.bf16.mxu0 0
        %1281 = vmatpush1.bf16.msra.mxu0 0
        %1282 = vmatprep.subr.bf16.mxu0 0
        %1283 = vmatpush1.bf16.msra.mxu0 0
        %1284 = vmatprep.subr.bf16.mxu0 0
        %1285 = vmatpush1.bf16.msra.mxu0 0
        %1286 = vmatprep.subr.bf16.mxu0 0
        %1287 = vmatpush1.bf16.msra.mxu0 0
        %1288 = vmatprep.subr.bf16.mxu0 0
        %1289 = vmatpush1.bf16.msra.mxu0 0
        %1290 = vmatprep.subr.bf16.mxu0 0
        %1291 = vmatpush1.bf16.msra.mxu0 0
        %1292 = vmatprep.subr.bf16.mxu0 0
        %1293 = vmatpush1.bf16.msra.mxu0 0
        %1294 = vmatprep.subr.bf16.mxu0 0
        %1295 = vmatpush1.bf16.msra.mxu0 0
        %1296 = vmatprep.subr.bf16.mxu0 0
        %1297 = vmatpush1.bf16.msra.mxu0 0
        %1298 = vmatprep.mubr.bf16.mxu0 0
        %1299 = vmatmul.mubr.bf16.gmra.mrb[0].mxu0 %v631
        %v1300 = vpop.f32.mrb[0].mxu0
        %v1301 = vadd.f32 %v1249, %v1300
        %v1302 = vpop.f32.mrb[0].mxu0
        %v1303 = vpop.f32.mrb[0].mxu0
        %v1304 = vpop.f32.mrb[0].mxu0
        %1305 = vdwg.mxu0
        %s1306 = scalar_lea.vmem %s6, 2
        %v1307 = vld [vmem:[%s1306] sm:$0x1]
        %v1309 = vlaneseq
        %v1310 = vshrl.u32 %v1309, 7
        %v1311 = vsub.s32 0, %v1310
        %v1312 = vrot.slane %v1307, %v1311
        %v1314 = vadd.f32 %v1301, %v1312
        %v1315 = vpack.c.bf16 %v1314, %v1314
        %s1316 = scalar_lea.vmem %s509, 8
        %v1317 = vld [vmem:[%s1316] sm:$0xf]
        %v1319 = vsel %vm683, %v1315, 0
        %v1322 = vsel %vm687, %v1317, 0
        %1324 = vmatprep.subr.bf16.mxu0 0
        %1325 = vmatpush1.bf16.msra.mxu0 %v1322
        %1326 = vmatprep.subr.bf16.mxu0 0
        %1327 = vmatpush1.bf16.msra.mxu0 0
        %1328 = vmatprep.subr.bf16.mxu0 0
        %1329 = vmatpush1.bf16.msra.mxu0 0
        %1330 = vmatprep.subr.bf16.mxu0 0
        %1331 = vmatpush1.bf16.msra.mxu0 0
        %1332 = vmatprep.subr.bf16.mxu0 0
        %1333 = vmatpush1.bf16.msra.mxu0 0
        %1334 = vmatprep.subr.bf16.mxu0 0
        %1335 = vmatpush1.bf16.msra.mxu0 0
        %1336 = vmatprep.subr.bf16.mxu0 0
        %1337 = vmatpush1.bf16.msra.mxu0 0
        %1338 = vmatprep.subr.bf16.mxu0 0
        %1339 = vmatpush1.bf16.msra.mxu0 0
        %1340 = vmatprep.subr.bf16.mxu0 0
        %1341 = vmatpush1.bf16.msra.mxu0 0
        %1342 = vmatprep.subr.bf16.mxu0 0
        %1343 = vmatpush1.bf16.msra.mxu0 0
        %1344 = vmatprep.subr.bf16.mxu0 0
        %1345 = vmatpush1.bf16.msra.mxu0 0
        %1346 = vmatprep.subr.bf16.mxu0 0
        %1347 = vmatpush1.bf16.msra.mxu0 0
        %1348 = vmatprep.subr.bf16.mxu0 0
        %1349 = vmatpush1.bf16.msra.mxu0 0
        %1350 = vmatprep.subr.bf16.mxu0 0
        %1351 = vmatpush1.bf16.msra.mxu0 0
        %1352 = vmatprep.subr.bf16.mxu0 0
        %1353 = vmatpush1.bf16.msra.mxu0 0
        %1354 = vmatprep.subr.bf16.mxu0 0
        %1355 = vmatpush1.bf16.msra.mxu0 0
        %1356 = vmatprep.mubr.bf16.mxu0 0
        %1357 = vmatmul.mubr.bf16.gmra.mrb[0].mxu0 %v1319
        %v1358 = vpop.f32.mrb[0].mxu0
        %v1359 = vadd.f32 0.0, %v1358
        %v1360 = vpop.f32.mrb[0].mxu0
        %v1361 = vpop.f32.mrb[0].mxu0
        %v1362 = vpop.f32.mrb[0].mxu0
        %1363 = vdwg.mxu0
        %v1364 = vsel %vm683, %v1359, -inf
        %1365 = vmax.xlane.f32.xlu0 %v1364
        %v1366 = vpop.xlane.xlu0 %1365
        %v1367 = vsub.f32 %v1359, %v1366
        %v1368 = vmul.f32 %v1367, 1.442695
        %v1369 = vpow.pop %v1368
        %v1370 = vsel %vm683, %v1369, 0.0
        %1371 = vadd.xlane.f32.xlu0 %v1370
        %v1372 = vpop.xlane.xlu0 %1371
        %v1373 = vrcp.pop %v1372
        %v1374 = vmul.f32 %v1369, %v1373
        %s1375 = scalar_lea.vmem %s490, 16 [#allocation5]
        %1376 = vst.msk [vmem:[%s1375] sm:$0xff] %vm683, %v1374
        %v1377 = vpack.c.bf16 %v1374, %v1374
        %s1378 = scalar_lea.vmem %s514, 8
        %v1379 = vld [vmem:[%s1378] sm:$0xf]
        %v1381 = vsel %vm683, %v1377, 0
        %v1384 = vsel %vm687, %v1379, 0
        %1386 = vmatprep.subr.bf16.mxu0 0
        %1387 = vmatpush1.bf16.msra.mxu0 %v1384
        %1388 = vmatprep.subr.bf16.mxu0 0
        %1389 = vmatpush1.bf16.msra.mxu0 0
        %1390 = vmatprep.subr.bf16.mxu0 0
        %1391 = vmatpush1.bf16.msra.mxu0 0
        %1392 = vmatprep.subr.bf16.mxu0 0
        %1393 = vmatpush1.bf16.msra.mxu0 0
        %1394 = vmatprep.subr.bf16.mxu0 0
        %1395 = vmatpush1.bf16.msra.mxu0 0
        %1396 = vmatprep.subr.bf16.mxu0 0
        %1397 = vmatpush1.bf16.msra.mxu0 0
        %1398 = vmatprep.subr.bf16.mxu0 0
        %1399 = vmatpush1.bf16.msra.mxu0 0
        %1400 = vmatprep.subr.bf16.mxu0 0
        %1401 = vmatpush1.bf16.msra.mxu0 0
        %1402 = vmatprep.subr.bf16.mxu0 0
        %1403 = vmatpush1.bf16.msra.mxu0 0
        %1404 = vmatprep.subr.bf16.mxu0 0
        %1405 = vmatpush1.bf16.msra.mxu0 0
        %1406 = vmatprep.subr.bf16.mxu0 0
        %1407 = vmatpush1.bf16.msra.mxu0 0
        %1408 = vmatprep.subr.bf16.mxu0 0
        %1409 = vmatpush1.bf16.msra.mxu0 0
        %1410 = vmatprep.subr.bf16.mxu0 0
        %1411 = vmatpush1.bf16.msra.mxu0 0
        %1412 = vmatprep.subr.bf16.mxu0 0
        %1413 = vmatpush1.bf16.msra.mxu0 0
        %1414 = vmatprep.subr.bf16.mxu0 0
        %1415 = vmatpush1.bf16.msra.mxu0 0
        %1416 = vmatprep.subr.bf16.mxu0 0
        %1417 = vmatpush1.bf16.msra.mxu0 0
        %1418 = vmatprep.mubr.bf16.mxu0 0
        %1419 = vmatmul.mubr.bf16.gmra.mrb[0].mxu0 %v1381
        %v1420 = vpop.f32.mrb[0].mxu0
        %v1421 = vadd.f32 0.0, %v1420
        %v1422 = vpop.f32.mrb[0].mxu0
        %v1423 = vpop.f32.mrb[0].mxu0
        %v1424 = vpop.f32.mrb[0].mxu0
        %1425 = vdwg.mxu0
        %v1426 = vld [vmem:[#allocation2] sm:$0xff]
        %v1427 = vpack.c.bf16 %v1421, %v1421
        %s1428 = scalar_lea.vmem %s7, 8
        %v1429 = vld [vmem:[%s1428] sm:$0xf]
        %v1431 = vsel %vm683, %v1427, 0
        %v1434 = vsel %vm687, %v1429, 0
        %1436 = vmatprep.subr.bf16.mxu0 0
        %1437 = vmatpush1.bf16.msra.mxu0 %v1434
        %1438 = vmatprep.subr.bf16.mxu0 0
        %1439 = vmatpush1.bf16.msra.mxu0 0
        %1440 = vmatprep.subr.bf16.mxu0 0
        %1441 = vmatpush1.bf16.msra.mxu0 0
        %1442 = vmatprep.subr.bf16.mxu0 0
        %1443 = vmatpush1.bf16.msra.mxu0 0
        %1444 = vmatprep.subr.bf16.mxu0 0
        %1445 = vmatpush1.bf16.msra.mxu0 0
        %1446 = vmatprep.subr.bf16.mxu0 0
        %1447 = vmatpush1.bf16.msra.mxu0 0
        %1448 = vmatprep.subr.bf16.mxu0 0
        %1449 = vmatpush1.bf16.msra.mxu0 0
        %1450 = vmatprep.subr.bf16.mxu0 0
        %1451 = vmatpush1.bf16.msra.mxu0 0
        %1452 = vmatprep.subr.bf16.mxu0 0
        %1453 = vmatpush1.bf16.msra.mxu0 0
        %1454 = vmatprep.subr.bf16.mxu0 0
        %1455 = vmatpush1.bf16.msra.mxu0 0
        %1456 = vmatprep.subr.bf16.mxu0 0
        %1457 = vmatpush1.bf16.msra.mxu0 0
        %1458 = vmatprep.subr.bf16.mxu0 0
        %1459 = vmatpush1.bf16.msra.mxu0 0
        %1460 = vmatprep.subr.bf16.mxu0 0
        %1461 = vmatpush1.bf16.msra.mxu0 0
        %1462 = vmatprep.subr.bf16.mxu0 0
        %1463 = vmatpush1.bf16.msra.mxu0 0
        %1464 = vmatprep.subr.bf16.mxu0 0
        %1465 = vmatpush1.bf16.msra.mxu0 0
        %1466 = vmatprep.subr.bf16.mxu0 0
        %1467 = vmatpush1.bf16.msra.mxu0 0
        %1468 = vmatprep.mubr.bf16.mxu0 0
        %1469 = vmatmul.mubr.bf16.gmra.mrb[0].mxu0 %v1431
        %v1470 = vpop.f32.mrb[0].mxu0
        %v1471 = vadd.f32 0.0, %v1470
        %v1472 = vpop.f32.mrb[0].mxu0
        %v1473 = vpop.f32.mrb[0].mxu0
        %v1474 = vpop.f32.mrb[0].mxu0
        %1475 = vdwg.mxu0
        %v1476 = vadd.f32 %v1426, %v1471
        %1477 = vst.msk [vmem:[#allocation2] sm:$0xff] %vm520, %v1476
        %s1478 = scalar_lea.vmem %s4, 48
        %v1479 = vld [vmem:[%s1478] sm:$0xf]
        %v1480 = vld [vmem:[%s1478 + $0x4] sm:$0xf]
        %v1481 = vld [vmem:[%s1478 + $0x8] sm:$0xf]
        %v1482 = vld [vmem:[%s1478 + $0xc] sm:$0xf]
        %s1483 = scalar_lea.vmem %s5, 144
        %v1484 = vld [vmem:[%s1483] sm:$0xf]
        %v1485 = vld [vmem:[%s1483 + $0x4] sm:$0xf]
        %v1486 = vld [vmem:[%s1483 + $0x8] sm:$0xf]
        %v1487 = vld [vmem:[%s1483 + $0xc] sm:$0xf]
        %v1488 = vld [vmem:[%s1483 + $0x10] sm:$0xf]
        %v1489 = vld [vmem:[%s1483 + $0x14] sm:$0xf]
        %v1490 = vld [vmem:[%s1483 + $0x18] sm:$0xf]
        %v1491 = vld [vmem:[%s1483 + $0x1c] sm:$0xf]
        %v1492 = vld [vmem:[%s1483 + $0x20] sm:$0xf]
        %v1493 = vld [vmem:[%s1483 + $0x24] sm:$0xf]
        %v1494 = vld [vmem:[%s1483 + $0x28] sm:$0xf]
        %v1495 = vld [vmem:[%s1483 + $0x2c] sm:$0xf]
        %v1508 = vunpack.c.l.b16 %v1484
        %v1509 = vunpack.c.l.b16 %v1485
        %v1510 = vunpack.c.l.b16 %v1486
        %v1511 = vunpack.c.l.b16 %v1487
        %v1512 = vunpack.c.l.b16 %v1488
        %v1513 = vunpack.c.l.b16 %v1489
        %v1514 = vunpack.c.l.b16 %v1490
        %v1515 = vunpack.c.l.b16 %v1491
        %v1516 = vunpack.c.l.b16 %v1492
        %v1517 = vunpack.c.l.b16 %v1493
        %v1518 = vunpack.c.l.b16 %v1494
        %v1519 = vunpack.c.l.b16 %v1495
        %v1520 = vpack.c.b16 %v1509, %v1508
        %v1521 = vpack.c.b16 %v1511, %v1510
        %v1522 = vpack.c.b16 %v1513, %v1512
        %v1523 = vpack.c.b16 %v1515, %v1514
        %v1524 = vpack.c.b16 %v1517, %v1516
        %v1525 = vpack.c.b16 %v1519, %v1518
        %1532 = vmatprep.subr.bf16.mxu0 0
        %1533 = vmatpush1.bf16.msra.mxu0 %v1520
        %1534 = vmatprep.subr.bf16.mxu0 0
        %1535 = vmatpush1.bf16.msra.mxu0 %v1521
        %1536 = vmatprep.subr.bf16.mxu0 0
        %1537 = vmatpush1.bf16.msra.mxu0 %v1522
        %1538 = vmatprep.subr.bf16.mxu0 0
        %1539 = vmatpush1.bf16.msra.mxu0 %v1523
        %1540 = vmatprep.subr.bf16.mxu0 0
        %1541 = vmatpush1.bf16.msra.mxu0 %v1524
        %1542 = vmatprep.subr.bf16.mxu0 0
        %1543 = vmatpush1.bf16.msra.mxu0 %v1525
        %1544 = vmatprep.subr.bf16.mxu0 0
        %1545 = vmatpush1.bf16.msra.mxu0 0
        %1546 = vmatprep.subr.bf16.mxu0 0
        %1547 = vmatpush1.bf16.msra.mxu0 0
        %1548 = vmatprep.subr.bf16.mxu0 0
        %1549 = vmatpush1.bf16.msra.mxu0 0
        %1550 = vmatprep.subr.bf16.mxu0 0
        %1551 = vmatpush1.bf16.msra.mxu0 0
        %1552 = vmatprep.subr.bf16.mxu0 0
        %1553 = vmatpush1.bf16.msra.mxu0 0
        %1554 = vmatprep.subr.bf16.mxu0 0
        %1555 = vmatpush1.bf16.msra.mxu0 0
        %1556 = vmatprep.subr.bf16.mxu0 0
        %1557 = vmatpush1.bf16.msra.mxu0 0
        %1558 = vmatprep.subr.bf16.mxu0 0
        %1559 = vmatpush1.bf16.msra.mxu0 0
        %1560 = vmatprep.subr.bf16.mxu0 0
        %1561 = vmatpush1.bf16.msra.mxu0 0
        %1562 = vmatprep.subr.bf16.mxu0 0
        %1563 = vmatpush1.bf16.msra.mxu0 0
        %1564 = vmatprep.mubr.bf16.mxu0 0
        %1565 = vmatmul.mubr.bf16.gmra.mrb[0].mxu0 %v576
        %v1566 = vpop.f32.mrb[0].mxu0
        %v1567 = vadd.f32 0.0, %v1566
        %v1568 = vpop.f32.mrb[0].mxu0
        %v1569 = vpop.f32.mrb[0].mxu0
        %v1570 = vpop.f32.mrb[0].mxu0
        %1571 = vdwg.mxu0
        %v1576 = vunpack.c.l.b16 %v1479
        %v1577 = vunpack.c.l.b16 %v1480
        %v1578 = vunpack.c.l.b16 %v1481
        %v1579 = vunpack.c.l.b16 %v1482
        %v1580 = vpack.c.b16 %v1577, %v1576
        %v1581 = vpack.c.b16 %v1579, %v1578
        %1584 = vmatprep.subr.bf16.mxu0 0
        %1585 = vmatpush1.bf16.msra.mxu0 %v1580
        %1586 = vmatprep.subr.bf16.mxu0 0
        %1587 = vmatpush1.bf16.msra.mxu0 %v1581
        %1588 = vmatprep.subr.bf16.mxu0 0
        %1589 = vmatpush1.bf16.msra.mxu0 0
        %1590 = vmatprep.subr.bf16.mxu0 0
        %1591 = vmatpush1.bf16.msra.mxu0 0
        %1592 = vmatprep.subr.bf16.mxu0 0
        %1593 = vmatpush1.bf16.msra.mxu0 0
        %1594 = vmatprep.subr.bf16.mxu0 0
        %1595 = vmatpush1.bf16.msra.mxu0 0
        %1596 = vmatprep.subr.bf16.mxu0 0
        %1597 = vmatpush1.bf16.msra.mxu0 0
        %1598 = vmatprep.subr.bf16.mxu0 0
        %1599 = vmatpush1.bf16.msra.mxu0 0
        %1600 = vmatprep.subr.bf16.mxu0 0
        %1601 = vmatpush1.bf16.msra.mxu0 0
        %1602 = vmatprep.subr.bf16.mxu0 0
        %1603 = vmatpush1.bf16.msra.mxu0 0
        %1604 = vmatprep.subr.bf16.mxu0 0
        %1605 = vmatpush1.bf16.msra.mxu0 0
        %1606 = vmatprep.subr.bf16.mxu0 0
        %1607 = vmatpush1.bf16.msra.mxu0 0
        %1608 = vmatprep.subr.bf16.mxu0 0
        %1609 = vmatpush1.bf16.msra.mxu0 0
        %1610 = vmatprep.subr.bf16.mxu0 0
        %1611 = vmatpush1.bf16.msra.mxu0 0
        %1612 = vmatprep.subr.bf16.mxu0 0
        %1613 = vmatpush1.bf16.msra.mxu0 0
        %1614 = vmatprep.subr.bf16.mxu0 0
        %1615 = vmatpush1.bf16.msra.mxu0 0
        %1616 = vmatprep.mubr.bf16.mxu0 0
        %1617 = vmatmul.mubr.bf16.gmra.mrb[0].mxu0 %v631
        %v1618 = vpop.f32.mrb[0].mxu0
        %v1619 = vadd.f32 %v1567, %v1618
        %v1620 = vpop.f32.mrb[0].mxu0
        %v1621 = vpop.f32.mrb[0].mxu0
        %v1622 = vpop.f32.mrb[0].mxu0
        %1623 = vdwg.mxu0
        %s1624 = scalar_lea.vmem %s6, 3
        %v1625 = vld [vmem:[%s1624] sm:$0x1]
        %v1627 = vlaneseq
        %v1628 = vshrl.u32 %v1627, 7
        %v1629 = vsub.s32 0, %v1628
        %v1630 = vrot.slane %v1625, %v1629
        %v1632 = vadd.f32 %v1619, %v1630
        %v1633 = vpack.c.bf16 %v1632, %v1632
        %s1634 = scalar_lea.vmem %s509, 12
        %v1635 = vld [vmem:[%s1634] sm:$0xf]
        %v1637 = vsel %vm683, %v1633, 0
        %v1640 = vsel %vm687, %v1635, 0
        %1642 = vmatprep.subr.bf16.mxu0 0
        %1643 = vmatpush1.bf16.msra.mxu0 %v1640
        %1644 = vmatprep.subr.bf16.mxu0 0
        %1645 = vmatpush1.bf16.msra.mxu0 0
        %1646 = vmatprep.subr.bf16.mxu0 0
        %1647 = vmatpush1.bf16.msra.mxu0 0
        %1648 = vmatprep.subr.bf16.mxu0 0
        %1649 = vmatpush1.bf16.msra.mxu0 0
        %1650 = vmatprep.subr.bf16.mxu0 0
        %1651 = vmatpush1.bf16.msra.mxu0 0
        %1652 = vmatprep.subr.bf16.mxu0 0
        %1653 = vmatpush1.bf16.msra.mxu0 0
        %1654 = vmatprep.subr.bf16.mxu0 0
        %1655 = vmatpush1.bf16.msra.mxu0 0
        %1656 = vmatprep.subr.bf16.mxu0 0
        %1657 = vmatpush1.bf16.msra.mxu0 0
        %1658 = vmatprep.subr.bf16.mxu0 0
        %1659 = vmatpush1.bf16.msra.mxu0 0
        %1660 = vmatprep.subr.bf16.mxu0 0
        %1661 = vmatpush1.bf16.msra.mxu0 0
        %1662 = vmatprep.subr.bf16.mxu0 0
        %1663 = vmatpush1.bf16.msra.mxu0 0
        %1664 = vmatprep.subr.bf16.mxu0 0
        %1665 = vmatpush1.bf16.msra.mxu0 0
        %1666 = vmatprep.subr.bf16.mxu0 0
        %1667 = vmatpush1.bf16.msra.mxu0 0
        %1668 = vmatprep.subr.bf16.mxu0 0
        %1669 = vmatpush1.bf16.msra.mxu0 0
        %1670 = vmatprep.subr.bf16.mxu0 0
        %1671 = vmatpush1.bf16.msra.mxu0 0
        %1672 = vmatprep.subr.bf16.mxu0 0
        %1673 = vmatpush1.bf16.msra.mxu0 0
        %1674 = vmatprep.mubr.bf16.mxu0 0
        %1675 = vmatmul.mubr.bf16.gmra.mrb[0].mxu0 %v1637
        %v1676 = vpop.f32.mrb[0].mxu0
        %v1677 = vadd.f32 0.0, %v1676
        %v1678 = vpop.f32.mrb[0].mxu0
        %v1679 = vpop.f32.mrb[0].mxu0
        %v1680 = vpop.f32.mrb[0].mxu0
        %1681 = vdwg.mxu0
        %v1682 = vsel %vm683, %v1677, -inf
        %1683 = vmax.xlane.f32.xlu0 %v1682
        %v1684 = vpop.xlane.xlu0 %1683
        %v1685 = vsub.f32 %v1677, %v1684
        %v1686 = vmul.f32 %v1685, 1.442695
        %v1687 = vpow.pop %v1686
        %v1688 = vsel %vm683, %v1687, 0.0
        %1689 = vadd.xlane.f32.xlu0 %v1688
        %v1690 = vpop.xlane.xlu0 %1689
        %v1691 = vrcp.pop %v1690
        %v1692 = vmul.f32 %v1687, %v1691
        %s1693 = scalar_lea.vmem %s490, 24 [#allocation5]
        %1694 = vst.msk [vmem:[%s1693] sm:$0xff] %vm683, %v1692
        %v1695 = vpack.c.bf16 %v1692, %v1692
        %s1696 = scalar_lea.vmem %s514, 12
        %v1697 = vld [vmem:[%s1696] sm:$0xf]
        %v1699 = vsel %vm683, %v1695, 0
        %v1702 = vsel %vm687, %v1697, 0
        %1704 = vmatprep.subr.bf16.mxu0 0
        %1705 = vmatpush1.bf16.msra.mxu0 %v1702
        %1706 = vmatprep.subr.bf16.mxu0 0
        %1707 = vmatpush1.bf16.msra.mxu0 0
        %1708 = vmatprep.subr.bf16.mxu0 0
        %1709 = vmatpush1.bf16.msra.mxu0 0
        %1710 = vmatprep.subr.bf16.mxu0 0
        %1711 = vmatpush1.bf16.msra.mxu0 0
        %1712 = vmatprep.subr.bf16.mxu0 0
        %1713 = vmatpush1.bf16.msra.mxu0 0
        %1714 = vmatprep.subr.bf16.mxu0 0
        %1715 = vmatpush1.bf16.msra.mxu0 0
        %1716 = vmatprep.subr.bf16.mxu0 0
        %1717 = vmatpush1.bf16.msra.mxu0 0
        %1718 = vmatprep.subr.bf16.mxu0 0
        %1719 = vmatpush1.bf16.msra.mxu0 0
        %1720 = vmatprep.subr.bf16.mxu0 0
        %1721 = vmatpush1.bf16.msra.mxu0 0
        %1722 = vmatprep.subr.bf16.mxu0 0
        %1723 = vmatpush1.bf16.msra.mxu0 0
        %1724 = vmatprep.subr.bf16.mxu0 0
        %1725 = vmatpush1.bf16.msra.mxu0 0
        %1726 = vmatprep.subr.bf16.mxu0 0
        %1727 = vmatpush1.bf16.msra.mxu0 0
        %1728 = vmatprep.subr.bf16.mxu0 0
        %1729 = vmatpush1.bf16.msra.mxu0 0
        %1730 = vmatprep.subr.bf16.mxu0 0
        %1731 = vmatpush1.bf16.msra.mxu0 0
        %1732 = vmatprep.subr.bf16.mxu0 0
        %1733 = vmatpush1.bf16.msra.mxu0 0
        %1734 = vmatprep.subr.bf16.mxu0 0
        %1735 = vmatpush1.bf16.msra.mxu0 0
        %1736 = vmatprep.mubr.bf16.mxu0 0
        %1737 = vmatmul.mubr.bf16.gmra.mrb[0].mxu0 %v1699
        %v1738 = vpop.f32.mrb[0].mxu0
        %v1739 = vadd.f32 0.0, %v1738
        %v1740 = vpop.f32.mrb[0].mxu0
        %v1741 = vpop.f32.mrb[0].mxu0
        %v1742 = vpop.f32.mrb[0].mxu0
        %1743 = vdwg.mxu0
        %v1744 = vld [vmem:[#allocation2] sm:$0xff]
        %v1745 = vpack.c.bf16 %v1739, %v1739
        %s1746 = scalar_lea.vmem %s7, 12
        %v1747 = vld [vmem:[%s1746] sm:$0xf]
        %v1749 = vsel %vm683, %v1745, 0
        %v1752 = vsel %vm687, %v1747, 0
        %1754 = vmatprep.subr.bf16.mxu0 0
        %1755 = vmatpush1.bf16.msra.mxu0 %v1752
        %1756 = vmatprep.subr.bf16.mxu0 0
        %1757 = vmatpush1.bf16.msra.mxu0 0
        %1758 = vmatprep.subr.bf16.mxu0 0
        %1759 = vmatpush1.bf16.msra.mxu0 0
        %1760 = vmatprep.subr.bf16.mxu0 0
        %1761 = vmatpush1.bf16.msra.mxu0 0
        %1762 = vmatprep.subr.bf16.mxu0 0
        %1763 = vmatpush1.bf16.msra.mxu0 0
        %1764 = vmatprep.subr.bf16.mxu0 0
        %1765 = vmatpush1.bf16.msra.mxu0 0
        %1766 = vmatprep.subr.bf16.mxu0 0
        %1767 = vmatpush1.bf16.msra.mxu0 0
        %1768 = vmatprep.subr.bf16.mxu0 0
        %1769 = vmatpush1.bf16.msra.mxu0 0
        %1770 = vmatprep.subr.bf16.mxu0 0
        %1771 = vmatpush1.bf16.msra.mxu0 0
        %1772 = vmatprep.subr.bf16.mxu0 0
        %1773 = vmatpush1.bf16.msra.mxu0 0
        %1774 = vmatprep.subr.bf16.mxu0 0
        %1775 = vmatpush1.bf16.msra.mxu0 0
        %1776 = vmatprep.subr.bf16.mxu0 0
        %1777 = vmatpush1.bf16.msra.mxu0 0
        %1778 = vmatprep.subr.bf16.mxu0 0
        %1779 = vmatpush1.bf16.msra.mxu0 0
        %1780 = vmatprep.subr.bf16.mxu0 0
        %1781 = vmatpush1.bf16.msra.mxu0 0
        %1782 = vmatprep.subr.bf16.mxu0 0
        %1783 = vmatpush1.bf16.msra.mxu0 0
        %1784 = vmatprep.subr.bf16.mxu0 0
        %1785 = vmatpush1.bf16.msra.mxu0 0
        %1786 = vmatprep.mubr.bf16.mxu0 0
        %1787 = vmatmul.mubr.bf16.gmra.mrb[0].mxu0 %v1749
        %v1788 = vpop.f32.mrb[0].mxu0
        %v1789 = vadd.f32 0.0, %v1788
        %v1790 = vpop.f32.mrb[0].mxu0
        %v1791 = vpop.f32.mrb[0].mxu0
        %v1792 = vpop.f32.mrb[0].mxu0
        %1793 = vdwg.mxu0
        %v1794 = vadd.f32 %v1744, %v1789
        %1795 = vst.msk [vmem:[#allocation2] sm:$0xff] %vm520, %v1794
        %v1796 = vld [vmem:[#allocation2] sm:$0xff]
        %v1797 = vadd.f32 %v516, %v1796
        %v1798 = vld [vmem:[%s8] sm:$0x1]
        %v1800 = vlaneseq
        %v1801 = vshrl.u32 %v1800, 7
        %v1802 = vsub.s32 0, %v1801
        %v1803 = vrot.slane %v1798, %v1802
        %v1805 = vadd.f32 %v1797, %v1803
        %v1806 = vsel %vm520, %v1805, 0.0
        %1807 = vadd.xlane.f32.xlu0 %v1806
        %v1808 = vpop.xlane.xlu0 %1807
        %v1809 = vrcp.pop 32.0
        %v1810 = vmul.f32 %v1808, %v1809
        %v1811 = vsub.f32 %v1805, %v1810
        %v1812 = vmul.f32 %v1811, %v1811
        %v1813 = vsel %vm520, %v1812, 0.0
        %1814 = vadd.xlane.f32.xlu0 %v1813
        %v1815 = vpop.xlane.xlu0 %1814
        %v1816 = vmul.f32 %v1815, %v1809
        %v1817 = vadd.f32 %v1816, 1e-05
        %v1818 = vrsqrt.pop %v1817
        %v1819 = vmul.f32 %v1811, %v1818
        %v1820 = vld [vmem:[%s9] sm:$0x1]
        %v1822 = vlaneseq
        %v1823 = vshrl.u32 %v1822, 7
        %v1824 = vsub.s32 0, %v1823
        %v1825 = vrot.slane %v1820, %v1824
        %v1827 = vmul.f32 %v1819, %v1825
        %v1828 = vld [vmem:[%s10] sm:$0x1]
        %v1830 = vlaneseq
        %v1831 = vshrl.u32 %v1830, 7
        %v1832 = vsub.s32 0, %v1831
        %v1833 = vrot.slane %v1828, %v1832
        %v1835 = vadd.f32 %v1827, %v1833
        %1836 = vst.msk [vmem:[%s483] sm:$0xff] %vm520, %v1835
        %s1837 = sand.u32 %s307, 1
        %s1838 = scalar_lea.sflag [#allocation4], %s1837
        %s1839 = sand.u32 %s307, 1
        %s1840 = smul.addr %s1839, 8
        %s1841 = scalar_lea.vmem [#allocation3], %s1840
        %s1842 = sand.u32 %s335, 1
        %s1843 = scalar_lea.sflag [#allocation6], %s1842
        %s1844 = sand.u32 %s335, 1
        %s1845 = smul.addr %s1844, 32
        %s1846 = scalar_lea.vmem [#allocation5], %s1845
        // Predicated region
        $region65: #{tpu_custom_call.1} parent=63 // pred_check
          %p1847 = pneg %p317
        $region66: #{tpu_custom_call.1} parent=63 // pred_check_branch
          %1849 = sbr.rel (%p1847) target = $region68
        $region67: #{tpu_custom_call.1} parent=63 // pred_region
          %s1851 = ssub.s32 128, 128
          %1852 = vsyncadd %s1838, %s1851
          %s1853 = sadd.s32 %s35, %s34
          %s1854 = smul.addr %s1853, 128
          %s1855 = scalar_lea.hbm %s11, %s1854
          %s1857 = sshll.u32 %s1841, 4
          %s1858 = int_to_ptr.vmem [resolvable:$true] %s1857
          %1860 = dma.vmem_to_hbm [thread:$0]  %s1858, 128, %s1855, %s1838
        $region68: #{tpu_custom_call.1} parent=63 // pred_fallthru
          _
        // Predicated region
        $region69: #{tpu_custom_call.1} parent=63 // pred_check
          %p1861 = pneg %p345
        $region70: #{tpu_custom_call.1} parent=63 // pred_check_branch
          %1863 = sbr.rel (%p1861) target = $region72
        $region71: #{tpu_custom_call.1} parent=63 // pred_region
          %s1865 = ssub.s32 512, 512
          %1866 = vsyncadd %s1843, %s1865
          %s1867 = sadd.s32 %s35, %s34
          %s1868 = smul.addr %s1867, 128
          %s1869 = scalar_lea.hbm %s12, %s1868
          %s1870 = sshll.u32 %s1846, 4
          %s1871 = int_to_ptr.vmem [resolvable:$true] %s1870
          %1876 = dma.vmem_to_hbm [thread:$0]  %s1871, 512, %s1869, %s1843, 128, 256, 8
        $region72: #{tpu_custom_call.1} parent=63 // pred_fallthru
          _
      $region64: #{tpu_custom_call.1} parent=5 // pred_fallthru
        _
      %p1877 = scmp.le.s32.totalorder 2, %s25
      // Predicated region
      $region73: #{tpu_custom_call.1} parent=5 // pred_check
        %p1878 = pneg %p1877
      $region74: #{tpu_custom_call.1} parent=5 // pred_check_branch
        %1880 = sbr.rel (%p1878) target = $region76
      $region75: #{tpu_custom_call.1} parent=5 // pred_region
        %s1881 = ssub.s32 %s25, 2
        // Predicated region
        $region77: #{tpu_custom_call.1} parent=75 // pred_check
          %p1882 = pneg %p323
        $region78: #{tpu_custom_call.1} parent=75 // pred_check_branch
          %1884 = sbr.rel (%p1882) target = $region80
        $region79: #{tpu_custom_call.1} parent=75 // pred_region
          %s1885 = sand.u32 %s308, 1
          %s1886 = scalar_lea.sflag [#allocation4], %s1885
          %s1887 = sand.u32 %s308, 1
          %s1888 = smul.addr %s1887, 8
          %s1889 = scalar_lea.vmem [#allocation3], %s1888
          %1890 = dma.done %s1886, 128
        $region80: #{tpu_custom_call.1} parent=75 // pred_fallthru
          _
        // Predicated region
        $region81: #{tpu_custom_call.1} parent=75 // pred_check
          %p1891 = pneg %p351
        $region82: #{tpu_custom_call.1} parent=75 // pred_check_branch
          %1893 = sbr.rel (%p1891) target = $region84
        $region83: #{tpu_custom_call.1} parent=75 // pred_region
          %s1894 = sand.u32 %s336, 1
          %s1895 = scalar_lea.sflag [#allocation6], %s1894
          %s1896 = sand.u32 %s336, 1
          %s1897 = smul.addr %s1896, 32
          %s1898 = scalar_lea.vmem [#allocation5], %s1897
          %1899 = dma.done %s1895, 512
        $region84: #{tpu_custom_call.1} parent=75 // pred_fallthru
          _
      $region76: #{tpu_custom_call.1} parent=5 // pred_fallthru
        _
    $region6: #{tpu_custom_call.1} parent=1 // loop_footer
      %s29 = sadd.s32 1, %s25
    $region7: #{tpu_custom_call.1} parent=1 // loop_footer_branch
      %24 = sbr.rel target = $region3
    $region8: #{tpu_custom_call.1} parent=1 // loop_exit
      _
    %1900 = vsyncpa [#allocation4], 1
    %s1901 = scalar_lea.sflag [#allocation4], 1
    %1902 = vsyncpa %s1901, 1
    %1903 = vsyncpa [#allocation6], 1
    %s1904 = scalar_lea.sflag [#allocation6], 1
    %1905 = vsyncpa %s1904, 1

</llo_original>
